<compile_context>
chip_gen: v7x
topology: tpu7x:2x2x1
jax: 0.10.0
libtpu: 0.0.40
codegen_flags: <defaults>
</compile_context>

<pallas_src>
import jax
import jax.numpy as jnp
from jax import lax
from jax.experimental import pallas as pl
from jax.experimental.pallas import tpu as pltpu

OUTPUT_DIM = 128  # self.output_dim in the torch module


# --------------------------------------------------------------------------
# Kernel: one query-row tile against all answers, emitting per-tile partials.
# --------------------------------------------------------------------------
def eli5_tile_kernel(q_ref, a_proj_ref, a_diag_ref, wq_ref, part_ref, colpart_ref):
    # q_ref:       [tq, d]     bf16  (row tile of pooled question reps)
    # a_proj_ref:  [b, 128]    bf16  (full projected answers, resident)
    # a_diag_ref:  [tq, 128]   bf16  (rows of a_proj aligned with this q tile)
    # wq_ref:      [d, 128]    bf16  (project_q weight, transposed)
    # part_ref:    [1, 1, 128] f32   (lane 0: sum(row_lse), lane 1: sum(diag))
    # colpart_ref: [1, 1, b]   f32   (per-column partial logsumexp of this tile)

    # project_q for this row tile: bf16 x bf16 -> f32 on the MXU.
    q_proj = jnp.dot(q_ref[...], wq_ref[...],
                     preferred_element_type=jnp.float32)              # [tq, 128]
    q_bf16 = q_proj.astype(jnp.bfloat16)

    # compare_scores row tile = q_proj @ a_proj.T (bf16 operands, f32 accum).
    scores = lax.dot_general(q_bf16, a_proj_ref[...],
                             (((1,), (1,)), ((), ())),
                             preferred_element_type=jnp.float32)      # [tq, b]

    # Diagonal entries of the global score matrix that live in this tile:
    # scores[r, i*tq + r] = <q_proj[r], a_proj[i*tq + r]>  (same bf16 rounding,
    # row-dot in f32; the aligned a_proj rows arrive via their own BlockSpec,
    # so no in-kernel dynamic sublane slice is needed).
    diag = jnp.sum(q_bf16.astype(jnp.float32)
                   * a_diag_ref[...].astype(jnp.float32),
                   axis=1, keepdims=True)                             # [tq, 1]

    # One shared exp pass (single EUP slot), per-row max for robust row-LSE.
    row_max = jnp.max(scores, axis=1, keepdims=True)                  # [tq, 1]
    e = jnp.exp(scores - row_max)                                     # [tq, b]
    row_lse = row_max + jnp.log(jnp.sum(e, axis=1, keepdims=True))    # [tq, 1]

    # Per-tile per-column partial logsumexp (loss_aq term), reusing `e` with a
    # cheap [tq,1] rescale to the tile max.
    m = jnp.max(row_max)                                              # scalar
    col_sum = jnp.sum(e * jnp.exp(row_max - m), axis=0, keepdims=True)  # [1, b]
    colpart_ref[0] = m + jnp.log(col_sum)

    # Pack the two scalar partial sums into a lane-dense 128-wide row
    # (unmasked vst; no lane-sparse (b,1) scratch, no finalize epilogue).
    lane = lax.broadcasted_iota(jnp.int32, (1, 128), 1)
    part_ref[0] = (jnp.where(lane == 0, jnp.sum(row_lse), 0.0)
                   + jnp.where(lane == 1, jnp.sum(diag), 0.0))


# --------------------------------------------------------------------------
# VMEM budgeting helpers (per-generation, derived from actual buffer sizes).
# --------------------------------------------------------------------------
def _vmem_capacity_bytes():
    try:
        cap = int(getattr(pltpu.get_tpu_info(), "vmem_capacity_bytes", 0))
        if cap > 0:
            return cap
    except Exception:
        pass
    return 64 * 1024 * 1024  # conservative (v7x per-TensorCore)


def _estimate_vmem_bytes(b, d, tq):
    """Conservative per-step VMEM footprint (double-buffered everywhere)."""
    const = 2 * 2 * (b * OUTPUT_DIM + d * OUTPUT_DIM)          # a_proj + Wq^T (bf16)
    tiles = 2 * 2 * (tq * d + tq * OUTPUT_DIM)                 # q tile + a_diag tile (bf16)
    outs = 2 * 4 * (8 * 128 + 8 * max(b, 128))                 # padded output blocks (f32)
    live = tq * OUTPUT_DIM * (4 + 2) + 3 * tq * b * 4          # q_proj f32+bf16, scores/e/tmp
    return const + tiles + outs + live


def _pick_tile(b, d, budget_bytes):
    """Largest sublane-aligned divisor of b whose working set fits the budget."""
    step = 16 if b % 16 == 0 else 8                            # bf16 sublane packing
    best = step
    for t in range(step, b + 1, step):
        if b % t == 0 and _estimate_vmem_bytes(b, d, t) <= budget_bytes:
            best = t
    return best


# --------------------------------------------------------------------------
# pallas_call wrapper.
# --------------------------------------------------------------------------
def _call_kernel(q16, a_proj16, wq_t, *, tq, vmem_limit, single_buffer_consts):
    b, d = q16.shape
    n_tiles = b // tq

    if single_buffer_consts:
        const_kw = dict(pipeline_mode=pl.Buffered(1))   # constant blocks: 1 buffer
    else:
        const_kw = {}

    in_specs = [
        pl.BlockSpec((tq, d), lambda i: (i, 0)),                          # q row tile
        pl.BlockSpec((b, OUTPUT_DIM), lambda i: (0, 0), **const_kw),      # a_proj (resident)
        pl.BlockSpec((tq, OUTPUT_DIM), lambda i: (i, 0)),                 # a_proj diag rows
        pl.BlockSpec((d, OUTPUT_DIM), lambda i: (0, 0), **const_kw),      # Wq^T
    ]
    out_specs = (
        pl.BlockSpec((1, 1, 128), lambda i: (i, 0, 0)),                   # packed scalars
        pl.BlockSpec((1, 1, b), lambda i: (i, 0, 0)),                     # column partial LSE
    )
    out_shape = (
        jax.ShapeDtypeStruct((n_tiles, 1, 128), jnp.float32),
        jax.ShapeDtypeStruct((n_tiles, 1, b), jnp.float32),
    )

    return pl.pallas_call(
        eli5_tile_kernel,
        out_shape=out_shape,
        grid=(n_tiles,),
        in_specs=in_specs,
        out_specs=out_specs,
        compiler_params=pltpu.CompilerParams(
            dimension_semantics=("parallel",),   # no cross-step carries -> megacore safe
            vmem_limit_bytes=vmem_limit),
    )(q16, a_proj16, a_proj16, wq_t)


def eli5_qa_loss(q_reps, a_reps, wq, wa, *, tq=None):
    """q_reps / a_reps: [B, D] pooled sent_encoder outputs (ideally bf16).
    wq / wa: torch-layout Linear weights [OUTPUT_DIM, D] (out, in), no bias.
    Returns the scalar contrastive loss of ELI5CQAEmbedding.forward."""
    b, d = q_reps.shape
    assert a_reps.shape == (b, d)
    assert wq.shape == (OUTPUT_DIM, d) and wa.shape == (OUTPUT_DIM, d)
    assert b % 8 == 0, "batch must be a multiple of the sublane tile (8)"

    # bf16 MXU operands (f32 accumulation in-kernel).  When the encoder already
    # emits bf16 these casts are no-ops (no extra HBM round trip).
    q16 = q_reps.astype(jnp.bfloat16)
    a16 = a_reps.astype(jnp.bfloat16)
    wq_t = jnp.asarray(wq).T.astype(jnp.bfloat16)   # [D, 128]
    wa_t = jnp.asarray(wa).T.astype(jnp.bfloat16)   # [D, 128]

    # project_a hoisted out of the kernel: one [B,D]@[D,128] matmul in XLA.
    a_proj16 = jnp.dot(a16, wa_t,
                       preferred_element_type=jnp.float32).astype(jnp.bfloat16)

    cap = _vmem_capacity_bytes()
    if tq is None:
        tq = _pick_tile(b, d, cap // 2)             # budget-driven tile size
    assert b % tq == 0 and tq % 8 == 0, "tq must divide B and be sublane-aligned"

    need = _estimate_vmem_bytes(b, d, tq)
    vmem_limit = int(min(max(need + (8 << 20), 16 << 20), int(cap * 0.9)))

    try:
        part, col_part = _call_kernel(q16, a_proj16, wq_t, tq=tq,
                                      vmem_limit=vmem_limit,
                                      single_buffer_consts=True)
    except Exception:
        # pl.Buffered(1) rejected by this jax build: fall back to default
        # (double-buffered) pipelining for the constant-index inputs.
        part, col_part = _call_kernel(q16, a_proj16, wq_t, tq=tq,
                                      vmem_limit=vmem_limit,
                                      single_buffer_consts=False)

    # Tiny epilogue combining the per-tile partials (n_tiles x b values).
    row_lse_sum = jnp.sum(part[:, 0, 0])
    diag_sum = jnp.sum(part[:, 0, 1])
    col_lse = jax.nn.logsumexp(col_part[:, 0, :], axis=0)      # [B]
    loss_qa = (row_lse_sum - diag_sum) / b
    loss_aq = (jnp.sum(col_lse) - diag_sum) / b
    return 0.5 * (loss_qa + loss_aq)


def synthetic_sent_encoder(emb_table, ids, mask):
    # TODO(synk): the real sent_encoder is an injected full BERT model; stand-in
    # is embedding lookup + masked mean pooling + tanh pooler (plain-JAX glue).
    tok = emb_table[ids]                                   # [B, S, D]
    m = mask.astype(jnp.float32)[..., None]                # [B, S, 1]
    pooled = (tok * m).sum(axis=1) / jnp.maximum(m.sum(axis=1), 1.0)
    # Emit bf16 directly so the loss kernel needs no standalone f32->bf16 cast.
    return jnp.tanh(pooled).astype(jnp.bfloat16)           # [B, D]


if __name__ == "__main__":
    # Small but hardware-friendly shapes: D lane-aligned (128); B=32 with an
    # explicit query-row tile of 16 gives a 2-step grid, exercising the
    # per-tile column-logsumexp partials and their epilogue combination.
    B, S, D, VOCAB = 32, 8, 128, 64
    TQ = 16

    key = jax.random.PRNGKey(0)
    k_emb, k_wq, k_wa, k_qid, k_aid = jax.random.split(key, 5)

    emb_table = jax.random.normal(k_emb, (VOCAB, D), dtype=jnp.float32) * 0.5
    # torch Linear.weight layout: (out_features=128, in_features=D)
    wq = jax.random.normal(k_wq, (OUTPUT_DIM, D), dtype=jnp.float32) * 0.2
    wa = jax.random.normal(k_wa, (OUTPUT_DIM, D), dtype=jnp.float32) * 0.2

    q_ids = jax.random.randint(k_qid, (B, S), 0, VOCAB, dtype=jnp.int32)
    a_ids = jax.random.randint(k_aid, (B, S), 0, VOCAB, dtype=jnp.int32)
    q_mask = jnp.ones((B, S), dtype=jnp.int32)
    a_mask = jnp.ones((B, S), dtype=jnp.int32)

    # Stand-in sent_encoder pooled outputs (glue, outside the kernel).
    q_reps = synthetic_sent_encoder(emb_table, q_ids, q_mask)   # [B, D] bf16
    a_reps = synthetic_sent_encoder(emb_table, a_ids, a_mask)   # [B, D] bf16

    loss = eli5_qa_loss(q_reps, a_reps, wq, wa, tq=TQ)
    loss = jax.block_until_ready(loss)

    # Pure-JAX reference of the module's forward math, with the same bf16
    # operand roundings as the kernel and high-precision f32 matmuls.
    hi = lax.Precision.HIGHEST
    qf = q_reps.astype(jnp.float32)
    af = a_reps.astype(jnp.float32)
    wqf = wq.astype(jnp.bfloat16).astype(jnp.float32)
    waf = wa.astype(jnp.bfloat16).astype(jnp.float32)
    qp = jnp.matmul(qf, wqf.T, precision=hi)
    ap = jnp.matmul(af, waf.T, precision=hi)
    qp16 = qp.astype(jnp.bfloat16).astype(jnp.float32)
    ap16 = ap.astype(jnp.bfloat16).astype(jnp.float32)
    sc = jnp.matmul(qp16, ap16.T, precision=hi)
    d_sc = jnp.diag(sc)
    ref_qa = jnp.mean(jax.nn.logsumexp(sc, axis=1) - d_sc)
    ref_aq = jnp.mean(jax.nn.logsumexp(sc, axis=0) - d_sc)
    ref = 0.5 * (ref_qa + ref_aq)
    assert jnp.allclose(loss, ref, rtol=2e-3, atol=2e-3), (loss, ref)

    print("KERNEL_OK")
</pallas_src>

<mosaic_0001>
module attributes {stable_mosaic.version = 11 : i64} {
  func.func @eli5_tile_kernel(%arg0: i32, %arg1: memref<16x128xbf16, #tpu.memory_space<vmem>>, %arg2: memref<32x128xbf16, #tpu.memory_space<vmem>>, %arg3: memref<16x128xbf16, #tpu.memory_space<vmem>>, %arg4: memref<128x128xbf16, #tpu.memory_space<vmem>>, %arg5: memref<1x1x128xf32, #tpu.memory_space<vmem>>, %arg6: memref<1x1x32xf32, #tpu.memory_space<vmem>>) attributes {dimension_semantics = [#tpu.dimension_semantics<parallel>], iteration_bounds = array<i64: 2>, scalar_prefetch = 0 : i64, scratch_operands = 0 : i64, tpu.core_type = #tpu.core_type<tc>, window_params = [{transform_indices = @transform_0, window_bounds = array<i64: 16, 128>}, {pipeline_mode = #tpu.pipeline_mode<synchronous>, transform_indices = @transform_1, window_bounds = array<i64: 32, 128>}, {transform_indices = @transform_2, window_bounds = array<i64: 16, 128>}, {pipeline_mode = #tpu.pipeline_mode<synchronous>, transform_indices = @transform_3, window_bounds = array<i64: 128, 128>}, {transform_indices = @transform_4, window_bounds = array<i64: 1, 1, 128>}, {transform_indices = @transform_5, window_bounds = array<i64: 1, 1, 32>}]} {
    %c0 = arith.constant 0 : index
    %c0_0 = arith.constant 0 : index
    %0 = vector.load %arg1[%c0, %c0_0] : memref<16x128xbf16, #tpu.memory_space<vmem>>, vector<16x128xbf16>
    %c0_1 = arith.constant 0 : index
    %c0_2 = arith.constant 0 : index
    %1 = vector.load %arg4[%c0_1, %c0_2] : memref<128x128xbf16, #tpu.memory_space<vmem>>, vector<128x128xbf16>
    %cst = arith.constant dense<0.000000e+00> : vector<16x128xf32>
    %2 = tpu.matmul %0, %1, %cst {dimension_numbers = #tpu.dot_dimension_numbers<[1], [0], [0], [1], [0, 0, 1, 1], [], []>} : vector<16x128xbf16>, vector<128x128xbf16>, vector<16x128xf32> -> vector<16x128xf32>
    %3 = arith.truncf %2 : vector<16x128xf32> to vector<16x128xbf16>
    %c0_3 = arith.constant 0 : index
    %c0_4 = arith.constant 0 : index
    %4 = vector.load %arg2[%c0_3, %c0_4] : memref<32x128xbf16, #tpu.memory_space<vmem>>, vector<32x128xbf16>
    %cst_5 = arith.constant dense<0.000000e+00> : vector<16x32xf32>
    %5 = tpu.matmul %3, %4, %cst_5 {dimension_numbers = #tpu.dot_dimension_numbers<[1], [1], [0], [0], [0, 0, 1, 0], [], []>} : vector<16x128xbf16>, vector<32x128xbf16>, vector<16x32xf32> -> vector<16x32xf32>
    %6 = arith.extf %3 : vector<16x128xbf16> to vector<16x128xf32>
    %c0_6 = arith.constant 0 : index
    %c0_7 = arith.constant 0 : index
    %7 = vector.load %arg3[%c0_6, %c0_7] : memref<16x128xbf16, #tpu.memory_space<vmem>>, vector<16x128xbf16>
    %8 = arith.extf %7 : vector<16x128xbf16> to vector<16x128xf32>
    %9 = arith.mulf %6, %8 : vector<16x128xf32>
    %cst_8 = arith.constant dense<0.000000e+00> : vector<16xf32>
    %10 = vector.multi_reduction <add>, %9, %cst_8 [1] : vector<16x128xf32> to vector<16xf32>
    %11 = vector.shape_cast %10 : vector<16xf32> to vector<16x1xf32>
    %cst_9 = arith.constant dense<0xFF800000> : vector<16xf32>
    %12 = vector.multi_reduction <maximumf>, %5, %cst_9 [1] : vector<16x32xf32> to vector<16xf32>
    %13 = vector.shape_cast %12 : vector<16xf32> to vector<16x1xf32>
    %14 = vector.broadcast %13 : vector<16x1xf32> to vector<16x32xf32>
    %15 = arith.subf %5, %14 : vector<16x32xf32>
    %16 = math.exp %15 : vector<16x32xf32>
    %cst_10 = arith.constant dense<0.000000e+00> : vector<16xf32>
    %17 = vector.multi_reduction <add>, %16, %cst_10 [1] : vector<16x32xf32> to vector<16xf32>
    %18 = vector.shape_cast %17 : vector<16xf32> to vector<16x1xf32>
    %19 = math.log %18 : vector<16x1xf32>
    %20 = arith.addf %13, %19 : vector<16x1xf32>
    %21 = vector.shape_cast %13 : vector<16x1xf32> to vector<1x16x1xf32>
    %cst_11 = arith.constant dense<0xFF800000> : vector<1xf32>
    %22 = vector.multi_reduction <maximumf>, %21, %cst_11 [1, 2] : vector<1x16x1xf32> to vector<1xf32>
    %23 = vector.shape_cast %22 : vector<1xf32> to vector<1x1x1xf32>
    %24 = vector.extract %23[0, 0, 0] : f32 from vector<1x1x1xf32>
    %25 = vector.broadcast %24 : f32 to vector<16x1xf32>
    %26 = arith.subf %13, %25 : vector<16x1xf32>
    %27 = math.exp %26 : vector<16x1xf32>
    %28 = vector.broadcast %27 : vector<16x1xf32> to vector<16x32xf32>
    %29 = arith.mulf %16, %28 : vector<16x32xf32>
    %cst_12 = arith.constant dense<0.000000e+00> : vector<32xf32>
    %30 = vector.multi_reduction <add>, %29, %cst_12 [0] : vector<16x32xf32> to vector<32xf32>
    %31 = vector.shape_cast %30 : vector<32xf32> to vector<1x32xf32>
    %32 = math.log %31 : vector<1x32xf32>
    %33 = vector.broadcast %24 : f32 to vector<1x32xf32>
    %34 = arith.addf %33, %32 : vector<1x32xf32>
    %c0_13 = arith.constant 0 : index
    %c0_14 = arith.constant 0 : index
    %c0_15 = arith.constant 0 : index
    %35 = vector.load %arg6[%c0_13, %c0_14, %c0_15] : memref<1x1x32xf32, #tpu.memory_space<vmem>>, vector<1x1x32xf32>
    %36 = vector.shape_cast %35 : vector<1x1x32xf32> to vector<1x32xf32>
    %37 = vector.shape_cast %34 : vector<1x32xf32> to vector<1x1x32xf32>
    tpu.vector_store %arg6[%c0_13, %c0_14, %c0_15], %37 {strides = array<i32>} : memref<1x1x32xf32, #tpu.memory_space<vmem>>, vector<1x1x32xf32>,
    %38 = tpu.iota {dimensions = array<i32: 1>} : vector<1x128xi32>
    %c0_i32 = arith.constant 0 : i32
    %39 = vector.broadcast %c0_i32 : i32 to vector<1x128xi32>
    %40 = arith.cmpi eq, %38, %39 : vector<1x128xi32>
    %41 = vector.shape_cast %20 : vector<16x1xf32> to vector<1x16x1xf32>
    %cst_16 = arith.constant dense<0.000000e+00> : vector<1xf32>
    %42 = vector.multi_reduction <add>, %41, %cst_16 [1, 2] : vector<1x16x1xf32> to vector<1xf32>
    %43 = vector.shape_cast %42 : vector<1xf32> to vector<1x1x1xf32>
    %44 = vector.extract %43[0, 0, 0] : f32 from vector<1x1x1xf32>
    %cst_17 = arith.constant 0.000000e+00 : f32
    %45 = vector.broadcast %44 : f32 to vector<1x128xf32>
    %46 = vector.broadcast %cst_17 : f32 to vector<1x128xf32>
    %47 = arith.select %40, %45, %46 : vector<1x128xi1>, vector<1x128xf32>
    %c1_i32 = arith.constant 1 : i32
    %48 = vector.broadcast %c1_i32 : i32 to vector<1x128xi32>
    %49 = arith.cmpi eq, %38, %48 : vector<1x128xi32>
    %50 = vector.shape_cast %11 : vector<16x1xf32> to vector<1x16x1xf32>
    %cst_18 = arith.constant dense<0.000000e+00> : vector<1xf32>
    %51 = vector.multi_reduction <add>, %50, %cst_18 [1, 2] : vector<1x16x1xf32> to vector<1xf32>
    %52 = vector.shape_cast %51 : vector<1xf32> to vector<1x1x1xf32>
    %53 = vector.extract %52[0, 0, 0] : f32 from vector<1x1x1xf32>
    %cst_19 = arith.constant 0.000000e+00 : f32
    %54 = vector.broadcast %53 : f32 to vector<1x128xf32>
    %55 = vector.broadcast %cst_19 : f32 to vector<1x128xf32>
    %56 = arith.select %49, %54, %55 : vector<1x128xi1>, vector<1x128xf32>
    %57 = arith.addf %47, %56 : vector<1x128xf32>
    %c0_20 = arith.constant 0 : index
    %c0_21 = arith.constant 0 : index
    %c0_22 = arith.constant 0 : index
    %58 = vector.load %arg5[%c0_20, %c0_21, %c0_22] : memref<1x1x128xf32, #tpu.memory_space<vmem>>, vector<1x1x128xf32>
    %59 = vector.shape_cast %58 : vector<1x1x128xf32> to vector<1x128xf32>
    %60 = vector.shape_cast %57 : vector<1x128xf32> to vector<1x1x128xf32>
    tpu.vector_store %arg5[%c0_20, %c0_21, %c0_22], %60 {strides = array<i32>} : memref<1x1x128xf32, #tpu.memory_space<vmem>>, vector<1x1x128xf32>,
    return
  }
  func.func @transform_0(%arg0: i32) -> (i32, i32) {
    %c0_i32 = arith.constant 0 : i32
    %c0_i32_0 = arith.constant 0 : i32
    return %arg0, %c0_i32 : i32, i32
  }
  func.func @transform_1(%arg0: i32) -> (i32, i32) {
    %c0_i32 = arith.constant 0 : i32
    %c0_i32_0 = arith.constant 0 : i32
    %c0_i32_1 = arith.constant 0 : i32
    return %c0_i32, %c0_i32_0 : i32, i32
  }
  func.func @transform_2(%arg0: i32) -> (i32, i32) {
    %c0_i32 = arith.constant 0 : i32
    %c0_i32_0 = arith.constant 0 : i32
    return %arg0, %c0_i32 : i32, i32
  }
  func.func @transform_3(%arg0: i32) -> (i32, i32) {
    %c0_i32 = arith.constant 0 : i32
    %c0_i32_0 = arith.constant 0 : i32
    %c0_i32_1 = arith.constant 0 : i32
    return %c0_i32, %c0_i32_0 : i32, i32
  }
  func.func @transform_4(%arg0: i32) -> (i32, i32, i32) {
    %c0_i32 = arith.constant 0 : i32
    %c0_i32_0 = arith.constant 0 : i32
    %c0_i32_1 = arith.constant 0 : i32
    return %arg0, %c0_i32, %c0_i32_0 : i32, i32, i32
  }
  func.func @transform_5(%arg0: i32) -> (i32, i32, i32) {
    %c0_i32 = arith.constant 0 : i32
    %c0_i32_0 = arith.constant 0 : i32
    %c0_i32_1 = arith.constant 0 : i32
    return %arg0, %c0_i32, %c0_i32_0 : i32, i32, i32
  }
}

module attributes {stable_mosaic.version = 11 : i64} {
  func.func @eli5_tile_kernel(%arg0: i32, %arg1: memref<16x128xbf16, #tpu.memory_space<vmem>>, %arg2: memref<32x128xbf16, #tpu.memory_space<vmem>>, %arg3: memref<16x128xbf16, #tpu.memory_space<vmem>>, %arg4: memref<128x128xbf16, #tpu.memory_space<vmem>>, %arg5: memref<1x1x128xf32, #tpu.memory_space<vmem>>, %arg6: memref<1x1x32xf32, #tpu.memory_space<vmem>>) attributes {dimension_semantics = [#tpu.dimension_semantics<parallel>], iteration_bounds = array<i64: 2>, scalar_prefetch = 0 : i64, scratch_operands = 0 : i64, tpu.core_type = #tpu.core_type<tc>, window_params = [{transform_indices = @transform_0, window_bounds = array<i64: 16, 128>}, {pipeline_mode = #tpu.pipeline_mode<synchronous>, transform_indices = @transform_1, window_bounds = array<i64: 32, 128>}, {transform_indices = @transform_2, window_bounds = array<i64: 16, 128>}, {pipeline_mode = #tpu.pipeline_mode<synchronous>, transform_indices = @transform_3, window_bounds = array<i64: 128, 128>}, {transform_indices = @transform_4, window_bounds = array<i64: 1, 1, 128>}, {transform_indices = @transform_5, window_bounds = array<i64: 1, 1, 32>}]} {
    %c0 = arith.constant 0 : index
    %c0_0 = arith.constant 0 : index
    %0 = vector.load %arg1[%c0, %c0_0] : memref<16x128xbf16, #tpu.memory_space<vmem>>, vector<16x128xbf16>
    %c0_1 = arith.constant 0 : index
    %c0_2 = arith.constant 0 : index
    %1 = vector.load %arg4[%c0_1, %c0_2] : memref<128x128xbf16, #tpu.memory_space<vmem>>, vector<128x128xbf16>
    %cst = arith.constant dense<0.000000e+00> : vector<16x128xf32>
    %2 = tpu.matmul %0, %1, %cst {dimension_numbers = #tpu.dot_dimension_numbers<[1], [0], [0], [1], [0, 0, 1, 1], [], []>} : vector<16x128xbf16>, vector<128x128xbf16>, vector<16x128xf32> -> vector<16x128xf32>
    %3 = arith.truncf %2 : vector<16x128xf32> to vector<16x128xbf16>
    %c0_3 = arith.constant 0 : index
    %c0_4 = arith.constant 0 : index
    %4 = vector.load %arg2[%c0_3, %c0_4] : memref<32x128xbf16, #tpu.memory_space<vmem>>, vector<32x128xbf16>
    %cst_5 = arith.constant dense<0.000000e+00> : vector<16x32xf32>
    %5 = tpu.matmul %3, %4, %cst_5 {dimension_numbers = #tpu.dot_dimension_numbers<[1], [1], [0], [0], [0, 0, 1, 0], [], []>} : vector<16x128xbf16>, vector<32x128xbf16>, vector<16x32xf32> -> vector<16x32xf32>
    %6 = arith.extf %3 : vector<16x128xbf16> to vector<16x128xf32>
    %c0_6 = arith.constant 0 : index
    %c0_7 = arith.constant 0 : index
    %7 = vector.load %arg3[%c0_6, %c0_7] : memref<16x128xbf16, #tpu.memory_space<vmem>>, vector<16x128xbf16>
    %8 = arith.extf %7 : vector<16x128xbf16> to vector<16x128xf32>
    %9 = arith.mulf %6, %8 : vector<16x128xf32>
    %cst_8 = arith.constant dense<0.000000e+00> : vector<16xf32>
    %10 = vector.multi_reduction <add>, %9, %cst_8 [1] : vector<16x128xf32> to vector<16xf32>
    %11 = vector.shape_cast %10 : vector<16xf32> to vector<16x1xf32>
    %cst_9 = arith.constant dense<0xFF800000> : vector<16xf32>
    %12 = vector.multi_reduction <maximumf>, %5, %cst_9 [1] : vector<16x32xf32> to vector<16xf32>
    %13 = vector.shape_cast %12 : vector<16xf32> to vector<16x1xf32>
    %14 = vector.broadcast %13 : vector<16x1xf32> to vector<16x32xf32>
    %15 = arith.subf %5, %14 : vector<16x32xf32>
    %16 = math.exp %15 : vector<16x32xf32>
    %cst_10 = arith.constant dense<0.000000e+00> : vector<16xf32>
    %17 = vector.multi_reduction <add>, %16, %cst_10 [1] : vector<16x32xf32> to vector<16xf32>
    %18 = vector.shape_cast %17 : vector<16xf32> to vector<16x1xf32>
    %19 = math.log %18 : vector<16x1xf32>
    %20 = arith.addf %13, %19 : vector<16x1xf32>
    %21 = vector.shape_cast %13 : vector<16x1xf32> to vector<1x16x1xf32>
    %cst_11 = arith.constant dense<0xFF800000> : vector<1xf32>
    %22 = vector.multi_reduction <maximumf>, %21, %cst_11 [1, 2] : vector<1x16x1xf32> to vector<1xf32>
    %23 = vector.shape_cast %22 : vector<1xf32> to vector<1x1x1xf32>
    %24 = vector.extract %23[0, 0, 0] : f32 from vector<1x1x1xf32>
    %25 = vector.broadcast %24 : f32 to vector<16x1xf32>
    %26 = arith.subf %13, %25 : vector<16x1xf32>
    %27 = math.exp %26 : vector<16x1xf32>
    %28 = vector.broadcast %27 : vector<16x1xf32> to vector<16x32xf32>
    %29 = arith.mulf %16, %28 : vector<16x32xf32>
    %cst_12 = arith.constant dense<0.000000e+00> : vector<32xf32>
    %30 = vector.multi_reduction <add>, %29, %cst_12 [0] : vector<16x32xf32> to vector<32xf32>
    %31 = vector.shape_cast %30 : vector<32xf32> to vector<1x32xf32>
    %32 = math.log %31 : vector<1x32xf32>
    %33 = vector.broadcast %24 : f32 to vector<1x32xf32>
    %34 = arith.addf %33, %32 : vector<1x32xf32>
    %c0_13 = arith.constant 0 : index
    %c0_14 = arith.constant 0 : index
    %c0_15 = arith.constant 0 : index
    %35 = vector.load %arg6[%c0_13, %c0_14, %c0_15] : memref<1x1x32xf32, #tpu.memory_space<vmem>>, vector<1x1x32xf32>
    %36 = vector.shape_cast %35 : vector<1x1x32xf32> to vector<1x32xf32>
    %37 = vector.shape_cast %34 : vector<1x32xf32> to vector<1x1x32xf32>
    tpu.vector_store %arg6[%c0_13, %c0_14, %c0_15], %37 {strides = array<i32>} : memref<1x1x32xf32, #tpu.memory_space<vmem>>, vector<1x1x32xf32>,
    %38 = tpu.iota {dimensions = array<i32: 1>} : vector<1x128xi32>
    %c0_i32 = arith.constant 0 : i32
    %39 = vector.broadcast %c0_i32 : i32 to vector<1x128xi32>
    %40 = arith.cmpi eq, %38, %39 : vector<1x128xi32>
    %41 = vector.shape_cast %20 : vector<16x1xf32> to vector<1x16x1xf32>
    %cst_16 = arith.constant dense<0.000000e+00> : vector<1xf32>
    %42 = vector.multi_reduction <add>, %41, %cst_16 [1, 2] : vector<1x16x1xf32> to vector<1xf32>
    %43 = vector.shape_cast %42 : vector<1xf32> to vector<1x1x1xf32>
    %44 = vector.extract %43[0, 0, 0] : f32 from vector<1x1x1xf32>
    %cst_17 = arith.constant 0.000000e+00 : f32
    %45 = vector.broadcast %44 : f32 to vector<1x128xf32>
    %46 = vector.broadcast %cst_17 : f32 to vector<1x128xf32>
    %47 = arith.select %40, %45, %46 : vector<1x128xi1>, vector<1x128xf32>
    %c1_i32 = arith.constant 1 : i32
    %48 = vector.broadcast %c1_i32 : i32 to vector<1x128xi32>
    %49 = arith.cmpi eq, %38, %48 : vector<1x128xi32>
    %50 = vector.shape_cast %11 : vector<16x1xf32> to vector<1x16x1xf32>
    %cst_18 = arith.constant dense<0.000000e+00> : vector<1xf32>
    %51 = vector.multi_reduction <add>, %50, %cst_18 [1, 2] : vector<1x16x1xf32> to vector<1xf32>
    %52 = vector.shape_cast %51 : vector<1xf32> to vector<1x1x1xf32>
    %53 = vector.extract %52[0, 0, 0] : f32 from vector<1x1x1xf32>
    %cst_19 = arith.constant 0.000000e+00 : f32
    %54 = vector.broadcast %53 : f32 to vector<1x128xf32>
    %55 = vector.broadcast %cst_19 : f32 to vector<1x128xf32>
    %56 = arith.select %49, %54, %55 : vector<1x128xi1>, vector<1x128xf32>
    %57 = arith.addf %47, %56 : vector<1x128xf32>
    %c0_20 = arith.constant 0 : index
    %c0_21 = arith.constant 0 : index
    %c0_22 = arith.constant 0 : index
    %58 = vector.load %arg5[%c0_20, %c0_21, %c0_22] : memref<1x1x128xf32, #tpu.memory_space<vmem>>, vector<1x1x128xf32>
    %59 = vector.shape_cast %58 : vector<1x1x128xf32> to vector<1x128xf32>
    %60 = vector.shape_cast %57 : vector<1x128xf32> to vector<1x1x128xf32>
    tpu.vector_store %arg5[%c0_20, %c0_21, %c0_22], %60 {strides = array<i32>} : memref<1x1x128xf32, #tpu.memory_space<vmem>>, vector<1x1x128xf32>,
    return
  }
  func.func @transform_0(%arg0: i32) -> (i32, i32) {
    %c0_i32 = arith.constant 0 : i32
    %c0_i32_0 = arith.constant 0 : i32
    return %arg0, %c0_i32 : i32, i32
  }
  func.func @transform_1(%arg0: i32) -> (i32, i32) {
    %c0_i32 = arith.constant 0 : i32
    %c0_i32_0 = arith.constant 0 : i32
    %c0_i32_1 = arith.constant 0 : i32
    return %c0_i32, %c0_i32_0 : i32, i32
  }
  func.func @transform_2(%arg0: i32) -> (i32, i32) {
    %c0_i32 = arith.constant 0 : i32
    %c0_i32_0 = arith.constant 0 : i32
    return %arg0, %c0_i32 : i32, i32
  }
  func.func @transform_3(%arg0: i32) -> (i32, i32) {
    %c0_i32 = arith.constant 0 : i32
    %c0_i32_0 = arith.constant 0 : i32
    %c0_i32_1 = arith.constant 0 : i32
    return %c0_i32, %c0_i32_0 : i32, i32
  }
  func.func @transform_4(%arg0: i32) -> (i32, i32, i32) {
    %c0_i32 = arith.constant 0 : i32
    %c0_i32_0 = arith.constant 0 : i32
    %c0_i32_1 = arith.constant 0 : i32
    return %arg0, %c0_i32, %c0_i32_0 : i32, i32, i32
  }
  func.func @transform_5(%arg0: i32) -> (i32, i32, i32) {
    %c0_i32 = arith.constant 0 : i32
    %c0_i32_0 = arith.constant 0 : i32
    %c0_i32_1 = arith.constant 0 : i32
    return %arg0, %c0_i32, %c0_i32_0 : i32, i32, i32
  }
}

</mosaic_0001>

<llo_original>
// kernel: tpu_custom_call.1
$region0: #{tpu_custom_call.1}
  #allocation0 [shape = 'u32[]', space=smem, size = 0x4, offset = 0x4, fixed_abs, tag = 'smem constant byte address 0x4 - core index']
  #allocation1 [shape = 'u32[144,128]{1,0:T(1,128)}', space=vmem, size = 0x12000, scoped, tag = 'internal scratch']
  %s0 = inlined_call_operand.hbm [shape: bf16[32,128], index: 0, kind: input, shape index: {}]
  %s1 = inlined_call_operand.hbm [shape: bf16[32,128], index: 1, kind: input, shape index: {}]
  %s2 = inlined_call_operand.hbm [shape: bf16[32,128], index: 2, kind: input, shape index: {}]
  %s3 = inlined_call_operand.hbm [shape: bf16[128,128], index: 3, kind: input, shape index: {}]
  %s4 = inlined_call_operand.hbm [shape: f32[2,1,128], index: 4, kind: output, shape index: {0}]
  %s5 = inlined_call_operand.hbm [shape: f32[2,1,32], index: 5, kind: output, shape index: {1}]
  %6 = xla_tuple %s4, %s5
  %s7 = sld [smem:[#allocation0]]
  $region73: #{tpu_custom_call.1} parent=0
    _
  %s9 = ssub.s32 1, %s7
  %s10 = scalar_select 0, %s9, %s7
  $region1: #{tpu_custom_call.1} parent=0
    #allocation2 [shape = 'u8[8192]{0}', space=vmem, size = 0x2000, scoped, tag = 'input window, operand 0']
    #allocation3 [shape = 's32[2]{0}', space=sflag, size = 0x8, scoped, tag = 'scoped memory for tpu_custom_call.1']
    #allocation4 [shape = 's32[2]{0}', space=sflag, size = 0x8, scoped, tag = 'scoped memory for tpu_custom_call.1']
    #allocation5 [shape = 'u8[8192]{0}', space=vmem, size = 0x2000, scoped, tag = 'input window, operand 1, single buffered']
    #allocation6 [shape = 's32[1]{0}', space=sflag, size = 0x4, scoped, tag = 'scoped memory for tpu_custom_call.1']
    #allocation7 [shape = 'u8[8192]{0}', space=vmem, size = 0x2000, scoped, tag = 'input window, operand 2']
    #allocation8 [shape = 'u8[32768]{0}', space=vmem, size = 0x8000, scoped, tag = 'input window, operand 3, single buffered']
    #allocation9 [shape = 'u8[1024]{0}', space=vmem, size = 0x400, scoped, tag = 'output window, operand 0']
    #allocation10 [shape = 'u8[1024]{0}', space=vmem, size = 0x400, scoped, tag = 'output window, operand 1']
    #allocation11 [shape = 's32[2]{0}', space=sflag, size = 0x8, scoped, tag = 'scoped memory for tpu_custom_call.1']
    %11 = vsyncpa [#allocation3], 0
    %s12 = scalar_lea.sflag [#allocation3], 1
    %13 = vsyncpa %s12, 0
    %14 = vsyncpa [#allocation6], 0
    %15 = vsyncpa [#allocation4], 0
    %s16 = scalar_lea.sflag [#allocation4], 1
    %17 = vsyncpa %s16, 0
    %18 = vsyncpa [#allocation11], 0
    %s19 = scalar_lea.sflag [#allocation11], 1
    %20 = vsyncpa %s19, 0
    loop: start=0, step=1, limit=4
    $region2: #{tpu_custom_call.1} parent=1 // loop_pre_header
      _
    $region3: #{tpu_custom_call.1} parent=1 // loop_header
      %s22 = sphi 0, %s26
      %p23 = scmp.ge.s32.totalorder %s22, 4
      %s32 = sphi 0, %s34
      %s35 = sphi 0, %s32
      %s36 = sphi 0, %s35
      %s52 = sphi 0, %s36
      %s56 = sphi 0, %s56
      %s58 = sphi 0, %s56
      %s59 = sphi 0, %s58
      %s73 = sphi 0, %s59
      %s79 = sphi 0, %s81
      %s82 = sphi 0, %s79
      %s83 = sphi 0, %s82
      %s99 = sphi 0, %s83
      %s103 = sphi 0, %s103
      %s105 = sphi 0, %s103
      %s106 = sphi 0, %s105
      %s120 = sphi 0, %s106
      %s126 = sphi 0, %s128
      %s129 = sphi 0, %s126
      %s130 = sphi 0, %s129
      %s146 = sphi 0, %s130
      %s152 = sphi 0, %s154
      %s155 = sphi 0, %s152
      %s156 = sphi 0, %s155
      %s172 = sphi 0, %s156
    $region4: #{tpu_custom_call.1} parent=1 // loop_header_branch
      %25 = sbr.rel (%p23) target = $region8
    $region5: #{tpu_custom_call.1} parent=1 // loop_body
      %s27 = ssub.s32 %s22, 1
      %s28 = ssub.s32 %s22, 2
      %s29 = sadd.s32 %s22, 1
      %s30 = ssub.s32 %s22, %s29
      %p31 = scmp.eq.s32.totalorder %s30, 0
      %s33 = sadd.s32 %s32, 1
      %s34 = scalar_select %p31, %s32, %s33
      %p37 = pneg %p31
      %p38 = scmp.eq.s32.totalorder %s22, 1
      %p39 = por %p37, %p38
      %p40 = scmp.ne.s32.totalorder %s32, %s35
      %p41 = scmp.eq.s32.totalorder %s22, 0
      %p42 = por %p40, %p41
      %p43 = scmp.ne.s32.totalorder %s32, %s35
      %p44 = scmp.eq.s32.totalorder %s27, 1
      %p45 = por %p43, %p44
      %p46 = scmp.ne.s32.totalorder %s35, %s36
      %p47 = scmp.eq.s32.totalorder %s27, 0
      %p48 = por %p46, %p47
      %p49 = scmp.ne.s32.totalorder %s35, %s36
      %p50 = scmp.eq.s32.totalorder %s28, 1
      %p51 = por %p49, %p50
      %p53 = scmp.ne.s32.totalorder %s36, %s52
      %p54 = scmp.eq.s32.totalorder %s28, 0
      %p55 = por %p53, %p54
      %s57 = sadd.s32 %s56, 1
      %p60 = scmp.eq.s32.totalorder %s22, 1
      %p61 = scmp.ne.s32.totalorder %s56, %s58
      %p62 = scmp.eq.s32.totalorder %s22, 0
      %p63 = por %p61, %p62
      %p64 = scmp.ne.s32.totalorder %s56, %s58
      %p65 = scmp.eq.s32.totalorder %s27, 1
      %p66 = por %p64, %p65
      %p67 = scmp.ne.s32.totalorder %s58, %s59
      %p68 = scmp.eq.s32.totalorder %s27, 0
      %p69 = por %p67, %p68
      %p70 = scmp.ne.s32.totalorder %s58, %s59
      %p71 = scmp.eq.s32.totalorder %s28, 1
      %p72 = por %p70, %p71
      %p74 = scmp.ne.s32.totalorder %s59, %s73
      %p75 = scmp.eq.s32.totalorder %s28, 0
      %p76 = por %p74, %p75
      %s77 = ssub.s32 %s22, %s29
      %p78 = scmp.eq.s32.totalorder %s77, 0
      %s80 = sadd.s32 %s79, 1
      %s81 = scalar_select %p78, %s79, %s80
      %p84 = pneg %p78
      %p85 = scmp.eq.s32.totalorder %s22, 1
      %p86 = por %p84, %p85
      %p87 = scmp.ne.s32.totalorder %s79, %s82
      %p88 = scmp.eq.s32.totalorder %s22, 0
      %p89 = por %p87, %p88
      %p90 = scmp.ne.s32.totalorder %s79, %s82
      %p91 = scmp.eq.s32.totalorder %s27, 1
      %p92 = por %p90, %p91
      %p93 = scmp.ne.s32.totalorder %s82, %s83
      %p94 = scmp.eq.s32.totalorder %s27, 0
      %p95 = por %p93, %p94
      %p96 = scmp.ne.s32.totalorder %s82, %s83
      %p97 = scmp.eq.s32.totalorder %s28, 1
      %p98 = por %p96, %p97
      %p100 = scmp.ne.s32.totalorder %s83, %s99
      %p101 = scmp.eq.s32.totalorder %s28, 0
      %p102 = por %p100, %p101
      %s104 = sadd.s32 %s103, 1
      %p107 = scmp.eq.s32.totalorder %s22, 1
      %p108 = scmp.ne.s32.totalorder %s103, %s105
      %p109 = scmp.eq.s32.totalorder %s22, 0
      %p110 = por %p108, %p109
      %p111 = scmp.ne.s32.totalorder %s103, %s105
      %p112 = scmp.eq.s32.totalorder %s27, 1
      %p113 = por %p111, %p112
      %p114 = scmp.ne.s32.totalorder %s105, %s106
      %p115 = scmp.eq.s32.totalorder %s27, 0
      %p116 = por %p114, %p115
      %p117 = scmp.ne.s32.totalorder %s105, %s106
      %p118 = scmp.eq.s32.totalorder %s28, 1
      %p119 = por %p117, %p118
      %p121 = scmp.ne.s32.totalorder %s106, %s120
      %p122 = scmp.eq.s32.totalorder %s28, 0
      %p123 = por %p121, %p122
      %s124 = ssub.s32 %s22, %s29
      %p125 = scmp.eq.s32.totalorder %s124, 0
      %s127 = sadd.s32 %s126, 1
      %s128 = scalar_select %p125, %s126, %s127
      %p131 = pneg %p125
      %p132 = scmp.eq.s32.totalorder %s22, 1
      %p133 = por %p131, %p132
      %p134 = scmp.ne.s32.totalorder %s126, %s129
      %p135 = scmp.eq.s32.totalorder %s22, 0
      %p136 = por %p134, %p135
      %p137 = scmp.ne.s32.totalorder %s126, %s129
      %p138 = scmp.eq.s32.totalorder %s27, 1
      %p139 = por %p137, %p138
      %p140 = scmp.ne.s32.totalorder %s129, %s130
      %p141 = scmp.eq.s32.totalorder %s27, 0
      %p142 = por %p140, %p141
      %p143 = scmp.ne.s32.totalorder %s129, %s130
      %p144 = scmp.eq.s32.totalorder %s28, 1
      %p145 = por %p143, %p144
      %p147 = scmp.ne.s32.totalorder %s130, %s146
      %p148 = scmp.eq.s32.totalorder %s28, 0
      %p149 = por %p147, %p148
      %s150 = ssub.s32 %s22, %s29
      %p151 = scmp.eq.s32.totalorder %s150, 0
      %s153 = sadd.s32 %s152, 1
      %s154 = scalar_select %p151, %s152, %s153
      %p157 = pneg %p151
      %p158 = scmp.eq.s32.totalorder %s22, 1
      %p159 = por %p157, %p158
      %p160 = scmp.ne.s32.totalorder %s152, %s155
      %p161 = scmp.eq.s32.totalorder %s22, 0
      %p162 = por %p160, %p161
      %p163 = scmp.ne.s32.totalorder %s152, %s155
      %p164 = scmp.eq.s32.totalorder %s27, 1
      %p165 = por %p163, %p164
      %p166 = scmp.ne.s32.totalorder %s155, %s156
      %p167 = scmp.eq.s32.totalorder %s27, 0
      %p168 = por %p166, %p167
      %p169 = scmp.ne.s32.totalorder %s155, %s156
      %p170 = scmp.eq.s32.totalorder %s28, 1
      %p171 = por %p169, %p170
      %p173 = scmp.ne.s32.totalorder %s156, %s172
      %p174 = scmp.eq.s32.totalorder %s28, 0
      %p175 = por %p173, %p174
      %p176 = scmp.le.s32.totalorder 1, %s22
      %p177 = scmp.lt.s32.totalorder %s22, 3
      %p178 = pnand %p176, %p177
      %p179 = pneg %p178
      // Predicated region
      $region9: #{tpu_custom_call.1} parent=5 // pred_check
        _
      $region10: #{tpu_custom_call.1} parent=5 // pred_check_branch
        %181 = sbr.rel (%p178) target = $region12
      $region11: #{tpu_custom_call.1} parent=5 // pred_region
        %s182 = ssub.s32 %s22, 1
        // Predicated region
        $region13: #{tpu_custom_call.1} parent=11 // pred_check
          %p183 = pneg %p69
        $region14: #{tpu_custom_call.1} parent=11 // pred_check_branch
          %185 = sbr.rel (%p183) target = $region16
        $region15: #{tpu_custom_call.1} parent=11 // pred_region
          %s187 = ssub.s32 256, 256
          %188 = vsyncadd [#allocation6], %s187
          %s189 = sshll.u32 [#allocation5], 4
          %s190 = int_to_ptr.vmem [resolvable:$true] %s189
          %195 = dma.hbm_to_vmem [thread:$0]  %s1, 256, %s190, [#allocation6], 64, 64, 4
        $region16: #{tpu_custom_call.1} parent=11 // pred_fallthru
          _
        // Predicated region
        $region17: #{tpu_custom_call.1} parent=11 // pred_check
          %p196 = pneg %p116
        $region18: #{tpu_custom_call.1} parent=11 // pred_check_branch
          %198 = sbr.rel (%p196) target = $region20
        $region19: #{tpu_custom_call.1} parent=11 // pred_region
          %s200 = ssub.s32 1024, 1024
          %201 = vsyncadd [#allocation6], %s200
          %s202 = sshll.u32 [#allocation8], 4
          %s203 = int_to_ptr.vmem [resolvable:$true] %s202
          %208 = dma.hbm_to_vmem [thread:$0]  %s3, 1024, %s203, [#allocation6], 64, 64, 4
        $region20: #{tpu_custom_call.1} parent=11 // pred_fallthru
          _
      $region12: #{tpu_custom_call.1} parent=5 // pred_fallthru
        _
      %p209 = scmp.lt.s32.totalorder %s22, 2
      // Predicated region
      $region21: #{tpu_custom_call.1} parent=5 // pred_check
        %p210 = pneg %p209
      $region22: #{tpu_custom_call.1} parent=5 // pred_check_branch
        %212 = sbr.rel (%p210) target = $region24
      $region23: #{tpu_custom_call.1} parent=5 // pred_region
        // Predicated region
        $region25: #{tpu_custom_call.1} parent=23 // pred_check
          %p213 = pneg %p42
        $region26: #{tpu_custom_call.1} parent=23 // pred_check_branch
          %215 = sbr.rel (%p213) target = $region28
        $region27: #{tpu_custom_call.1} parent=23 // pred_region
          %s216 = sand.u32 %s22, 1
          %s217 = scalar_lea.sflag [#allocation3], %s216
          %s218 = sand.u32 %s32, 1
          %s219 = smul.addr %s218, 8
          %s220 = scalar_lea.vmem [#allocation2], %s219
          %s221 = smul.u32 2, %s22
          %s223 = ssub.s32 128, 128
          %224 = vsyncadd %s217, %s223
          %s225 = smul.addr %s221, 64
          %s226 = scalar_lea.hbm %s0, %s225
          %s227 = sshll.u32 %s220, 4
          %s228 = int_to_ptr.vmem [resolvable:$true] %s227
          %233 = dma.hbm_to_vmem [thread:$0]  %s226, 128, %s228, %s217, 64, 64, 4
        $region28: #{tpu_custom_call.1} parent=23 // pred_fallthru
          _
        // Predicated region
        $region29: #{tpu_custom_call.1} parent=23 // pred_check
          %p234 = pneg %p89
        $region30: #{tpu_custom_call.1} parent=23 // pred_check_branch
          %236 = sbr.rel (%p234) target = $region32
        $region31: #{tpu_custom_call.1} parent=23 // pred_region
          %s237 = sand.u32 %s22, 1
          %s238 = scalar_lea.sflag [#allocation3], %s237
          %s239 = sand.u32 %s79, 1
          %s240 = smul.addr %s239, 8
          %s241 = scalar_lea.vmem [#allocation7], %s240
          %s242 = smul.u32 2, %s22
          %s244 = ssub.s32 128, 128
          %245 = vsyncadd %s238, %s244
          %s246 = smul.addr %s242, 64
          %s247 = scalar_lea.hbm %s2, %s246
          %s248 = sshll.u32 %s241, 4
          %s249 = int_to_ptr.vmem [resolvable:$true] %s248
          %254 = dma.hbm_to_vmem [thread:$0]  %s247, 128, %s249, %s238, 64, 64, 4
        $region32: #{tpu_custom_call.1} parent=23 // pred_fallthru
          _
      $region24: #{tpu_custom_call.1} parent=5 // pred_fallthru
        _
      %p255 = scmp.le.s32.totalorder 1, %s22
      %p256 = scmp.lt.s32.totalorder %s22, 3
      %p257 = pnand %p255, %p256
      %p258 = pneg %p257
      // Predicated region
      $region33: #{tpu_custom_call.1} parent=5 // pred_check
        _
      $region34: #{tpu_custom_call.1} parent=5 // pred_check_branch
        %260 = sbr.rel (%p257) target = $region36
      $region35: #{tpu_custom_call.1} parent=5 // pred_region
        %s261 = ssub.s32 %s22, 1
        %s262 = sand.u32 %s27, 1
        %s263 = scalar_lea.sflag [#allocation3], %s262
        %s264 = sand.u32 %s35, 1
        %s265 = smul.addr %s264, 8
        %s266 = scalar_lea.vmem [#allocation2], %s265
        // Predicated region
        $region37: #{tpu_custom_call.1} parent=35 // pred_check
          %p267 = pneg %p48
        $region38: #{tpu_custom_call.1} parent=35 // pred_check_branch
          %269 = sbr.rel (%p267) target = $region40
        $region39: #{tpu_custom_call.1} parent=35 // pred_region
          %270 = dma.done %s263, 128
        $region40: #{tpu_custom_call.1} parent=35 // pred_fallthru
          _
        // Predicated region
        $region41: #{tpu_custom_call.1} parent=35 // pred_check
          %p271 = pneg %p69
        $region42: #{tpu_custom_call.1} parent=35 // pred_check_branch
          %273 = sbr.rel (%p271) target = $region44
        $region43: #{tpu_custom_call.1} parent=35 // pred_region
          %274 = dma.done [#allocation6], 256
        $region44: #{tpu_custom_call.1} parent=35 // pred_fallthru
          _
        %s275 = sand.u32 %s27, 1
        %s276 = scalar_lea.sflag [#allocation3], %s275
        %s277 = sand.u32 %s82, 1
        %s278 = smul.addr %s277, 8
        %s279 = scalar_lea.vmem [#allocation7], %s278
        // Predicated region
        $region45: #{tpu_custom_call.1} parent=35 // pred_check
          %p280 = pneg %p95
        $region46: #{tpu_custom_call.1} parent=35 // pred_check_branch
          %282 = sbr.rel (%p280) target = $region48
        $region47: #{tpu_custom_call.1} parent=35 // pred_region
          %283 = dma.done %s276, 128
        $region48: #{tpu_custom_call.1} parent=35 // pred_fallthru
          _
        // Predicated region
        $region49: #{tpu_custom_call.1} parent=35 // pred_check
          %p284 = pneg %p116
        $region50: #{tpu_custom_call.1} parent=35 // pred_check_branch
          %286 = sbr.rel (%p284) target = $region52
        $region51: #{tpu_custom_call.1} parent=35 // pred_region
          %287 = dma.done [#allocation6], 1024
        $region52: #{tpu_custom_call.1} parent=35 // pred_fallthru
          _
        %s288 = sand.u32 %s27, 1
        %s289 = scalar_lea.sflag [#allocation3], %s288
        %s290 = sand.u32 %s35, 1
        %s291 = smul.addr %s290, 8
        %s292 = scalar_lea.vmem [#allocation2], %s291
        %p293 = pneg %p48
        %p294 = pneg %p45
        %p295 = pneg %p69
        %p296 = pneg %p66
        %s297 = sand.u32 %s27, 1
        %s298 = scalar_lea.sflag [#allocation3], %s297
        %s299 = sand.u32 %s82, 1
        %s300 = smul.addr %s299, 8
        %s301 = scalar_lea.vmem [#allocation7], %s300
        %p302 = pneg %p95
        %p303 = pneg %p92
        %p304 = pneg %p116
        %p305 = pneg %p113
        %p306 = pneg %p142
        %p307 = pneg %p139
        %s308 = sand.u32 %s129, 1
        %s309 = scalar_lea.sflag [#allocation4], %s308
        %s310 = sand.u32 %s129, 1
        %s311 = scalar_lea.vmem [#allocation9], %s310
        %p312 = pneg %p168
        %p313 = pneg %p165
        %s314 = sand.u32 %s155, 1
        %s315 = scalar_lea.sflag [#allocation11], %s314
        %s316 = sand.u32 %s155, 1
        %s317 = scalar_lea.vmem [#allocation10], %s316
        %s318 = smul.u32 2, %s27
        %s319 = smul.u32 2, %s27
        %v321 = vld [vmem:[%s266] sm:$0xf]
        %v322 = vld [vmem:[%s266 + $0x4] sm:$0xf]
        %v323 = vld [vmem:[#allocation8] sm:$0xf]
        %v324 = vld [vmem:[#allocation8 + $0x4] sm:$0xf]
        %v325 = vld [vmem:[#allocation8 + $0x8] sm:$0xf]
        %v326 = vld [vmem:[#allocation8 + $0xc] sm:$0xf]
        %v327 = vld [vmem:[#allocation8 + $0x10] sm:$0xf]
        %v328 = vld [vmem:[#allocation8 + $0x14] sm:$0xf]
        %v329 = vld [vmem:[#allocation8 + $0x18] sm:$0xf]
        %v330 = vld [vmem:[#allocation8 + $0x1c] sm:$0xf]
        %v331 = vld [vmem:[#allocation8 + $0x20] sm:$0xf]
        %v332 = vld [vmem:[#allocation8 + $0x24] sm:$0xf]
        %v333 = vld [vmem:[#allocation8 + $0x28] sm:$0xf]
        %v334 = vld [vmem:[#allocation8 + $0x2c] sm:$0xf]
        %v335 = vld [vmem:[#allocation8 + $0x30] sm:$0xf]
        %v336 = vld [vmem:[#allocation8 + $0x34] sm:$0xf]
        %v337 = vld [vmem:[#allocation8 + $0x38] sm:$0xf]
        %v338 = vld [vmem:[#allocation8 + $0x3c] sm:$0xf]
        %v341 = vunpack.c.l.b16 %v321
        %v342 = vunpack.c.l.b16 %v322
        %v343 = vpack.c.b16 %v342, %v341
        %v361 = vunpack.c.l.b16 %v323
        %v362 = vunpack.c.l.b16 %v324
        %v363 = vunpack.c.l.b16 %v325
        %v364 = vunpack.c.l.b16 %v326
        %v365 = vunpack.c.l.b16 %v327
        %v366 = vunpack.c.l.b16 %v328
        %v367 = vunpack.c.l.b16 %v329
        %v368 = vunpack.c.l.b16 %v330
        %v369 = vunpack.c.l.b16 %v331
        %v370 = vunpack.c.l.b16 %v332
        %v371 = vunpack.c.l.b16 %v333
        %v372 = vunpack.c.l.b16 %v334
        %v373 = vunpack.c.l.b16 %v335
        %v374 = vunpack.c.l.b16 %v336
        %v375 = vunpack.c.l.b16 %v337
        %v376 = vunpack.c.l.b16 %v338
        %v377 = vpack.c.b16 %v362, %v361
        %v378 = vpack.c.b16 %v364, %v363
        %v379 = vpack.c.b16 %v366, %v365
        %v380 = vpack.c.b16 %v368, %v367
        %v381 = vpack.c.b16 %v370, %v369
        %v382 = vpack.c.b16 %v372, %v371
        %v383 = vpack.c.b16 %v374, %v373
        %v384 = vpack.c.b16 %v376, %v375
        %393 = vmatprep.subr.bf16.mxu0 0
        %394 = vmatpush1.bf16.msra.mxu0 %v377
        %395 = vmatprep.subr.bf16.mxu0 0
        %396 = vmatpush1.bf16.msra.mxu0 %v378
        %397 = vmatprep.subr.bf16.mxu0 0
        %398 = vmatpush1.bf16.msra.mxu0 %v379
        %399 = vmatprep.subr.bf16.mxu0 0
        %400 = vmatpush1.bf16.msra.mxu0 %v380
        %401 = vmatprep.subr.bf16.mxu0 0
        %402 = vmatpush1.bf16.msra.mxu0 %v381
        %403 = vmatprep.subr.bf16.mxu0 0
        %404 = vmatpush1.bf16.msra.mxu0 %v382
        %405 = vmatprep.subr.bf16.mxu0 0
        %406 = vmatpush1.bf16.msra.mxu0 %v383
        %407 = vmatprep.subr.bf16.mxu0 0
        %408 = vmatpush1.bf16.msra.mxu0 %v384
        %409 = vmatprep.subr.bf16.mxu0 0
        %410 = vmatpush1.bf16.msra.mxu0 0
        %411 = vmatprep.subr.bf16.mxu0 0
        %412 = vmatpush1.bf16.msra.mxu0 0
        %413 = vmatprep.subr.bf16.mxu0 0
        %414 = vmatpush1.bf16.msra.mxu0 0
        %415 = vmatprep.subr.bf16.mxu0 0
        %416 = vmatpush1.bf16.msra.mxu0 0
        %417 = vmatprep.subr.bf16.mxu0 0
        %418 = vmatpush1.bf16.msra.mxu0 0
        %419 = vmatprep.subr.bf16.mxu0 0
        %420 = vmatpush1.bf16.msra.mxu0 0
        %421 = vmatprep.subr.bf16.mxu0 0
        %422 = vmatpush1.bf16.msra.mxu0 0
        %423 = vmatprep.subr.bf16.mxu0 0
        %424 = vmatpush1.bf16.msra.mxu0 0
        %425 = vmatprep.mubr.bf16.mxu0 0
        %426 = vmatmul.mubr.bf16.gmra.mrb[0].mxu0 %v343
        %v427 = vpop.f32.mrb[0].mxu0
        %v428 = vadd.f32 0.0, %v427
        %v429 = vpop.f32.mrb[0].mxu0
        %v430 = vpop.f32.mrb[0].mxu0
        %v431 = vadd.f32 0.0, %v430
        %v432 = vpop.f32.mrb[0].mxu0
        %433 = vdwg.mxu0
        %v434 = vpack.c.bf16 %v431, %v428
        %v435 = vld [vmem:[#allocation5] sm:$0xf]
        %v436 = vld [vmem:[#allocation5 + $0x4] sm:$0xf]
        %v437 = vld [vmem:[#allocation5 + $0x8] sm:$0xf]
        %v438 = vld [vmem:[#allocation5 + $0xc] sm:$0xf]
        %v443 = vunpack.c.l.b16 %v435
        %v444 = vunpack.c.l.b16 %v436
        %v445 = vunpack.c.l.b16 %v437
        %v446 = vunpack.c.l.b16 %v438
        %v447 = vpack.c.b16 %v444, %v443
        %v448 = vpack.c.b16 %v446, %v445
        %451 = vmatprep.subr.bf16.mxu0 0
        %452 = vmatpush1.bf16.xpose.msra.mxu0 %v447
        %453 = vmatprep.subr.bf16.mxu0 0
        %454 = vmatpush1.bf16.xpose.msra.mxu0 %v448
        %455 = vmatprep.subr.bf16.mxu0 0
        %456 = vmatpush1.bf16.xpose.msra.mxu0 0
        %457 = vmatprep.subr.bf16.mxu0 0
        %458 = vmatpush1.bf16.xpose.msra.mxu0 0
        %459 = vmatprep.subr.bf16.mxu0 0
        %460 = vmatpush1.bf16.xpose.msra.mxu0 0
        %461 = vmatprep.subr.bf16.mxu0 0
        %462 = vmatpush1.bf16.xpose.msra.mxu0 0
        %463 = vmatprep.subr.bf16.mxu0 0
        %464 = vmatpush1.bf16.xpose.msra.mxu0 0
        %465 = vmatprep.subr.bf16.mxu0 0
        %466 = vmatpush1.bf16.xpose.msra.mxu0 0
        %467 = vmatprep.subr.bf16.mxu0 0
        %468 = vmatpush1.bf16.xpose.msra.mxu0 0
        %469 = vmatprep.subr.bf16.mxu0 0
        %470 = vmatpush1.bf16.xpose.msra.mxu0 0
        %471 = vmatprep.subr.bf16.mxu0 0
        %472 = vmatpush1.bf16.xpose.msra.mxu0 0
        %473 = vmatprep.subr.bf16.mxu0 0
        %474 = vmatpush1.bf16.xpose.msra.mxu0 0
        %475 = vmatprep.subr.bf16.mxu0 0
        %476 = vmatpush1.bf16.xpose.msra.mxu0 0
        %477 = vmatprep.subr.bf16.mxu0 0
        %478 = vmatpush1.bf16.xpose.msra.mxu0 0
        %479 = vmatprep.subr.bf16.mxu0 0
        %480 = vmatpush1.bf16.xpose.msra.mxu0 0
        %481 = vmatprep.subr.bf16.mxu0 0
        %482 = vmatpush1.bf16.xpose.msra.mxu0 0
        %483 = vmatprep.mubr.bf16.mxu0 0
        %484 = vmatmul.mubr.bf16.gmra.mrb[0].mxu0 %v434
        %v485 = vpop.f32.mrb[0].mxu0
        %v486 = vadd.f32 0.0, %v485
        %v487 = vpop.f32.mrb[0].mxu0
        %v488 = vpop.f32.mrb[0].mxu0
        %v489 = vadd.f32 0.0, %v488
        %v490 = vpop.f32.mrb[0].mxu0
        %491 = vdwg.mxu0
        %v492 = vunpack.c.l.bf16 %v434
        %v493 = vunpack.c.h.bf16 %v434
        %v494 = vld [vmem:[%s279] sm:$0xf]
        %v495 = vld [vmem:[%s279 + $0x4] sm:$0xf]
        %v496 = vunpack.c.l.bf16 %v494
        %v497 = vunpack.c.l.bf16 %v495
        %v498 = vmul.f32 %v492, %v496
        %v499 = vmul.f32 %v493, %v497
        %500 = vadd.xlane.f32.xlu0 %v498
        %v501 = vpop.xlane.xlu0 %500
        %502 = vadd.xlane.f32.xlu0 %v499
        %v503 = vpop.xlane.xlu0 %502
        %vm504 = vcmask 261120
        %v505 = vsel %vm504, %v486, -inf
        %506 = vmax.xlane.f32.xlu0 %v505
        %v507 = vpop.xlane.xlu0 %506
        %v508 = vsel %vm504, %v489, -inf
        %509 = vmax.xlane.f32.xlu0 %v508
        %v510 = vpop.xlane.xlu0 %509
        %v511 = vsub.f32 %v486, %v507
        %v512 = vsub.f32 %v489, %v510
        %v513 = vmul.f32 %v511, 1.442695
        %v514 = vpow.pop %v513
        %v515 = vmul.f32 %v512, 1.442695
        %v516 = vpow.pop %v515
        %v517 = vsel %vm504, %v514, 0.0
        %518 = vadd.xlane.f32.xlu0 %v517
        %v519 = vpop.xlane.xlu0 %518
        %v520 = vsel %vm504, %v516, 0.0
        %521 = vadd.xlane.f32.xlu0 %v520
        %v522 = vpop.xlane.xlu0 %521
        %v523 = vlog2.pop %v519
        %v524 = vmul.f32 %v523, 0.6931472
        %v525 = vlog2.pop %v522
        %v526 = vmul.f32 %v525, 0.6931472
        %v527 = vadd.f32 %v507, %v524
        %v528 = vadd.f32 %v510, %v526
        %v529 = vmax.f32 %v507, %v510
        %v530 = vrot.slane %v529, 4
        %v531 = vmax.f32 %v529, %v530
        %v532 = vrot.slane %v531, 2
        %v533 = vmax.f32 %v531, %v532
        %v534 = vrot.slane %v533, 1
        %v535 = vmax.f32 %v533, %v534
        %s536 = vtos %v535
        %v537 = vstv %s536
        %v538 = vsub.f32 %v507, %v537
        %v539 = vsub.f32 %v510, %v537
        %v540 = vmul.f32 %v538, 1.442695
        %v541 = vpow.pop %v540
        %v542 = vmul.f32 %v539, 1.442695
        %v543 = vpow.pop %v542
        %v544 = vmul.f32 %v514, %v541
        %v545 = vmul.f32 %v516, %v543
        %v546 = vsel %vm504, %v544, 0.0
        %v547 = vsel %vm504, %v545, 0.0
        %v548 = vadd.f32 %v546, %v547
        %v549 = vrot.slane %v548, 4
        %v550 = vadd.f32 %v548, %v549
        %v551 = vrot.slane %v550, 2
        %v552 = vadd.f32 %v550, %v551
        %v553 = vrot.slane %v552, 1
        %v554 = vadd.f32 %v552, %v553
        %v555 = vlog2.pop %v554
        %v556 = vmul.f32 %v555, 0.6931472
        %v557 = vadd.f32 %v537, %v556
        %vm558 = vcmask 253952
        %559 = vst.msk [vmem:[%s317] sm:$0x1] %vm558, %v557
        %v560 = vlaneseq
        %v561 = vand.u32 %v560, 127
        %vm562 = vcmp.eq.s32.totalorder %v561, 0
        %vm563 = vcmask 7168
        %v564 = vsel %vm563, %v527, 0.0
        %v565 = vsel %vm563, %v528, 0.0
        %v566 = vadd.f32 %v564, %v565
        %567 = vadd.xlane.f32.xlu0 %v566
        %v568 = vpop.xlane.xlu0 %567
        %v569 = vrot.slane %v568, 4
        %v570 = vadd.f32 %v568, %v569
        %v571 = vrot.slane %v570, 2
        %v572 = vadd.f32 %v570, %v571
        %v573 = vrot.slane %v572, 1
        %v574 = vadd.f32 %v572, %v573
        %s575 = vtos %v574
        %v576 = vstv %s575
        %v577 = vsel %vm562, %v576, 0.0
        %vm578 = vcmp.eq.s32.totalorder %v561, 1
        %v579 = vsel %vm563, %v501, 0.0
        %v580 = vsel %vm563, %v503, 0.0
        %v581 = vadd.f32 %v579, %v580
        %582 = vadd.xlane.f32.xlu0 %v581
        %v583 = vpop.xlane.xlu0 %582
        %v584 = vrot.slane %v583, 4
        %v585 = vadd.f32 %v583, %v584
        %v586 = vrot.slane %v585, 2
        %v587 = vadd.f32 %v585, %v586
        %v588 = vrot.slane %v587, 1
        %v589 = vadd.f32 %v587, %v588
        %s590 = vtos %v589
        %v591 = vstv %s590
        %v592 = vsel %vm578, %v591, 0.0
        %v593 = vadd.f32 %v577, %v592
        %594 = vst [vmem:[%s311] sm:$0x1] %v593
        %s595 = sand.u32 %s129, 1
        %s596 = scalar_lea.sflag [#allocation4], %s595
        %s597 = sand.u32 %s129, 1
        %s598 = scalar_lea.vmem [#allocation9], %s597
        %s599 = sand.u32 %s155, 1
        %s600 = scalar_lea.sflag [#allocation11], %s599
        %s601 = sand.u32 %s155, 1
        %s602 = scalar_lea.vmem [#allocation10], %s601
        // Predicated region
        $region53: #{tpu_custom_call.1} parent=35 // pred_check
          %p603 = pneg %p139
        $region54: #{tpu_custom_call.1} parent=35 // pred_check_branch
          %605 = sbr.rel (%p603) target = $region56
        $region55: #{tpu_custom_call.1} parent=35 // pred_region
          %s607 = ssub.s32 16, 16
          %608 = vsyncadd %s596, %s607
          %s609 = smul.addr %s27, 16
          %s610 = scalar_lea.hbm %s4, %s609
          %s612 = sshll.u32 %s598, 4
          %s613 = int_to_ptr.vmem [resolvable:$true] %s612
          %615 = dma.vmem_to_hbm [thread:$0]  %s613, 16, %s610, %s596
        $region56: #{tpu_custom_call.1} parent=35 // pred_fallthru
          _
        // Predicated region
        $region57: #{tpu_custom_call.1} parent=35 // pred_check
          %p616 = pneg %p165
        $region58: #{tpu_custom_call.1} parent=35 // pred_check_branch
          %618 = sbr.rel (%p616) target = $region60
        $region59: #{tpu_custom_call.1} parent=35 // pred_region
          %s620 = ssub.s32 16, 16
          %621 = vsyncadd %s600, %s620
          %s622 = smul.addr %s27, 16
          %s623 = scalar_lea.hbm %s5, %s622
          %s625 = sshll.u32 %s602, 4
          %s626 = int_to_ptr.vmem [resolvable:$true] %s625
          %628 = dma.vmem_to_hbm [thread:$0]  %s626, 16, %s623, %s600
        $region60: #{tpu_custom_call.1} parent=35 // pred_fallthru
          _
      $region36: #{tpu_custom_call.1} parent=5 // pred_fallthru
        _
      %p629 = scmp.le.s32.totalorder 2, %s22
      // Predicated region
      $region61: #{tpu_custom_call.1} parent=5 // pred_check
        %p630 = pneg %p629
      $region62: #{tpu_custom_call.1} parent=5 // pred_check_branch
        %632 = sbr.rel (%p630) target = $region64
      $region63: #{tpu_custom_call.1} parent=5 // pred_region
        %s633 = ssub.s32 %s22, 2
        // Predicated region
        $region65: #{tpu_custom_call.1} parent=63 // pred_check
          %p634 = pneg %p145
        $region66: #{tpu_custom_call.1} parent=63 // pred_check_branch
          %636 = sbr.rel (%p634) target = $region68
        $region67: #{tpu_custom_call.1} parent=63 // pred_region
          %s637 = sand.u32 %s130, 1
          %s638 = scalar_lea.sflag [#allocation4], %s637
          %s639 = sand.u32 %s130, 1
          %s640 = scalar_lea.vmem [#allocation9], %s639
          %641 = dma.done %s638, 16
        $region68: #{tpu_custom_call.1} parent=63 // pred_fallthru
          _
        // Predicated region
        $region69: #{tpu_custom_call.1} parent=63 // pred_check
          %p642 = pneg %p171
        $region70: #{tpu_custom_call.1} parent=63 // pred_check_branch
          %644 = sbr.rel (%p642) target = $region72
        $region71: #{tpu_custom_call.1} parent=63 // pred_region
          %s645 = sand.u32 %s156, 1
          %s646 = scalar_lea.sflag [#allocation11], %s645
          %s647 = sand.u32 %s156, 1
          %s648 = scalar_lea.vmem [#allocation10], %s647
          %649 = dma.done %s646, 16
        $region72: #{tpu_custom_call.1} parent=63 // pred_fallthru
          _
      $region64: #{tpu_custom_call.1} parent=5 // pred_fallthru
        _
    $region6: #{tpu_custom_call.1} parent=1 // loop_footer
      %s26 = sadd.s32 1, %s22
    $region7: #{tpu_custom_call.1} parent=1 // loop_footer_branch
      %21 = sbr.rel target = $region3
    $region8: #{tpu_custom_call.1} parent=1 // loop_exit
      _
    %650 = vsyncpa [#allocation3], 1
    %s651 = scalar_lea.sflag [#allocation3], 1
    %652 = vsyncpa %s651, 1
    %653 = vsyncpa [#allocation6], 1
    %654 = vsyncpa [#allocation4], 1
    %s655 = scalar_lea.sflag [#allocation4], 1
    %656 = vsyncpa %s655, 1
    %657 = vsyncpa [#allocation11], 1
    %s658 = scalar_lea.sflag [#allocation11], 1
    %659 = vsyncpa %s658, 1

// kernel: tpu_custom_call.1
$region0: #{tpu_custom_call.1}
  #allocation0 [shape = 'u32[]', space=smem, size = 0x4, offset = 0x4, fixed_abs, tag = 'smem constant byte address 0x4 - core index']
  #allocation1 [shape = 'u32[144,128]{1,0:T(1,128)}', space=vmem, size = 0x12000, scoped, tag = 'internal scratch']
  %s0 = inlined_call_operand.hbm [shape: bf16[32,128], index: 0, kind: input, shape index: {}]
  %s1 = inlined_call_operand.hbm [shape: bf16[32,128], index: 1, kind: input, shape index: {}]
  %s2 = inlined_call_operand.hbm [shape: bf16[32,128], index: 2, kind: input, shape index: {}]
  %s3 = inlined_call_operand.hbm [shape: bf16[128,128], index: 3, kind: input, shape index: {}]
  %s4 = inlined_call_operand.hbm [shape: f32[2,1,128], index: 4, kind: output, shape index: {0}]
  %s5 = inlined_call_operand.hbm [shape: f32[2,1,32], index: 5, kind: output, shape index: {1}]
  %6 = xla_tuple %s4, %s5
  %s7 = sld [smem:[#allocation0]]
  $region73: #{tpu_custom_call.1} parent=0
    _
  %s9 = ssub.s32 1, %s7
  %s10 = scalar_select 0, %s9, %s7
  $region1: #{tpu_custom_call.1} parent=0
    #allocation2 [shape = 'u8[8192]{0}', space=vmem, size = 0x2000, scoped, tag = 'input window, operand 0']
    #allocation3 [shape = 's32[2]{0}', space=sflag, size = 0x8, scoped, tag = 'scoped memory for tpu_custom_call.1']
    #allocation4 [shape = 's32[2]{0}', space=sflag, size = 0x8, scoped, tag = 'scoped memory for tpu_custom_call.1']
    #allocation5 [shape = 'u8[8192]{0}', space=vmem, size = 0x2000, scoped, tag = 'input window, operand 1, single buffered']
    #allocation6 [shape = 's32[1]{0}', space=sflag, size = 0x4, scoped, tag = 'scoped memory for tpu_custom_call.1']
    #allocation7 [shape = 'u8[8192]{0}', space=vmem, size = 0x2000, scoped, tag = 'input window, operand 2']
    #allocation8 [shape = 'u8[32768]{0}', space=vmem, size = 0x8000, scoped, tag = 'input window, operand 3, single buffered']
    #allocation9 [shape = 'u8[1024]{0}', space=vmem, size = 0x400, scoped, tag = 'output window, operand 0']
    #allocation10 [shape = 'u8[1024]{0}', space=vmem, size = 0x400, scoped, tag = 'output window, operand 1']
    #allocation11 [shape = 's32[2]{0}', space=sflag, size = 0x8, scoped, tag = 'scoped memory for tpu_custom_call.1']
    %11 = vsyncpa [#allocation3], 0
    %s12 = scalar_lea.sflag [#allocation3], 1
    %13 = vsyncpa %s12, 0
    %14 = vsyncpa [#allocation6], 0
    %15 = vsyncpa [#allocation4], 0
    %s16 = scalar_lea.sflag [#allocation4], 1
    %17 = vsyncpa %s16, 0
    %18 = vsyncpa [#allocation11], 0
    %s19 = scalar_lea.sflag [#allocation11], 1
    %20 = vsyncpa %s19, 0
    loop: start=0, step=1, limit=4
    $region2: #{tpu_custom_call.1} parent=1 // loop_pre_header
      _
    $region3: #{tpu_custom_call.1} parent=1 // loop_header
      %s22 = sphi 0, %s26
      %p23 = scmp.ge.s32.totalorder %s22, 4
      %s32 = sphi 0, %s34
      %s35 = sphi 0, %s32
      %s36 = sphi 0, %s35
      %s52 = sphi 0, %s36
      %s56 = sphi 0, %s56
      %s58 = sphi 0, %s56
      %s59 = sphi 0, %s58
      %s73 = sphi 0, %s59
      %s79 = sphi 0, %s81
      %s82 = sphi 0, %s79
      %s83 = sphi 0, %s82
      %s99 = sphi 0, %s83
      %s103 = sphi 0, %s103
      %s105 = sphi 0, %s103
      %s106 = sphi 0, %s105
      %s120 = sphi 0, %s106
      %s126 = sphi 0, %s128
      %s129 = sphi 0, %s126
      %s130 = sphi 0, %s129
      %s146 = sphi 0, %s130
      %s152 = sphi 0, %s154
      %s155 = sphi 0, %s152
      %s156 = sphi 0, %s155
      %s172 = sphi 0, %s156
    $region4: #{tpu_custom_call.1} parent=1 // loop_header_branch
      %25 = sbr.rel (%p23) target = $region8
    $region5: #{tpu_custom_call.1} parent=1 // loop_body
      %s27 = ssub.s32 %s22, 1
      %s28 = ssub.s32 %s22, 2
      %s29 = sadd.s32 %s22, 1
      %s30 = ssub.s32 %s22, %s29
      %p31 = scmp.eq.s32.totalorder %s30, 0
      %s33 = sadd.s32 %s32, 1
      %s34 = scalar_select %p31, %s32, %s33
      %p37 = pneg %p31
      %p38 = scmp.eq.s32.totalorder %s22, 1
      %p39 = por %p37, %p38
      %p40 = scmp.ne.s32.totalorder %s32, %s35
      %p41 = scmp.eq.s32.totalorder %s22, 0
      %p42 = por %p40, %p41
      %p43 = scmp.ne.s32.totalorder %s32, %s35
      %p44 = scmp.eq.s32.totalorder %s27, 1
      %p45 = por %p43, %p44
      %p46 = scmp.ne.s32.totalorder %s35, %s36
      %p47 = scmp.eq.s32.totalorder %s27, 0
      %p48 = por %p46, %p47
      %p49 = scmp.ne.s32.totalorder %s35, %s36
      %p50 = scmp.eq.s32.totalorder %s28, 1
      %p51 = por %p49, %p50
      %p53 = scmp.ne.s32.totalorder %s36, %s52
      %p54 = scmp.eq.s32.totalorder %s28, 0
      %p55 = por %p53, %p54
      %s57 = sadd.s32 %s56, 1
      %p60 = scmp.eq.s32.totalorder %s22, 1
      %p61 = scmp.ne.s32.totalorder %s56, %s58
      %p62 = scmp.eq.s32.totalorder %s22, 0
      %p63 = por %p61, %p62
      %p64 = scmp.ne.s32.totalorder %s56, %s58
      %p65 = scmp.eq.s32.totalorder %s27, 1
      %p66 = por %p64, %p65
      %p67 = scmp.ne.s32.totalorder %s58, %s59
      %p68 = scmp.eq.s32.totalorder %s27, 0
      %p69 = por %p67, %p68
      %p70 = scmp.ne.s32.totalorder %s58, %s59
      %p71 = scmp.eq.s32.totalorder %s28, 1
      %p72 = por %p70, %p71
      %p74 = scmp.ne.s32.totalorder %s59, %s73
      %p75 = scmp.eq.s32.totalorder %s28, 0
      %p76 = por %p74, %p75
      %s77 = ssub.s32 %s22, %s29
      %p78 = scmp.eq.s32.totalorder %s77, 0
      %s80 = sadd.s32 %s79, 1
      %s81 = scalar_select %p78, %s79, %s80
      %p84 = pneg %p78
      %p85 = scmp.eq.s32.totalorder %s22, 1
      %p86 = por %p84, %p85
      %p87 = scmp.ne.s32.totalorder %s79, %s82
      %p88 = scmp.eq.s32.totalorder %s22, 0
      %p89 = por %p87, %p88
      %p90 = scmp.ne.s32.totalorder %s79, %s82
      %p91 = scmp.eq.s32.totalorder %s27, 1
      %p92 = por %p90, %p91
      %p93 = scmp.ne.s32.totalorder %s82, %s83
      %p94 = scmp.eq.s32.totalorder %s27, 0
      %p95 = por %p93, %p94
      %p96 = scmp.ne.s32.totalorder %s82, %s83
      %p97 = scmp.eq.s32.totalorder %s28, 1
      %p98 = por %p96, %p97
      %p100 = scmp.ne.s32.totalorder %s83, %s99
      %p101 = scmp.eq.s32.totalorder %s28, 0
      %p102 = por %p100, %p101
      %s104 = sadd.s32 %s103, 1
      %p107 = scmp.eq.s32.totalorder %s22, 1
      %p108 = scmp.ne.s32.totalorder %s103, %s105
      %p109 = scmp.eq.s32.totalorder %s22, 0
      %p110 = por %p108, %p109
      %p111 = scmp.ne.s32.totalorder %s103, %s105
      %p112 = scmp.eq.s32.totalorder %s27, 1
      %p113 = por %p111, %p112
      %p114 = scmp.ne.s32.totalorder %s105, %s106
      %p115 = scmp.eq.s32.totalorder %s27, 0
      %p116 = por %p114, %p115
      %p117 = scmp.ne.s32.totalorder %s105, %s106
      %p118 = scmp.eq.s32.totalorder %s28, 1
      %p119 = por %p117, %p118
      %p121 = scmp.ne.s32.totalorder %s106, %s120
      %p122 = scmp.eq.s32.totalorder %s28, 0
      %p123 = por %p121, %p122
      %s124 = ssub.s32 %s22, %s29
      %p125 = scmp.eq.s32.totalorder %s124, 0
      %s127 = sadd.s32 %s126, 1
      %s128 = scalar_select %p125, %s126, %s127
      %p131 = pneg %p125
      %p132 = scmp.eq.s32.totalorder %s22, 1
      %p133 = por %p131, %p132
      %p134 = scmp.ne.s32.totalorder %s126, %s129
      %p135 = scmp.eq.s32.totalorder %s22, 0
      %p136 = por %p134, %p135
      %p137 = scmp.ne.s32.totalorder %s126, %s129
      %p138 = scmp.eq.s32.totalorder %s27, 1
      %p139 = por %p137, %p138
      %p140 = scmp.ne.s32.totalorder %s129, %s130
      %p141 = scmp.eq.s32.totalorder %s27, 0
      %p142 = por %p140, %p141
      %p143 = scmp.ne.s32.totalorder %s129, %s130
      %p144 = scmp.eq.s32.totalorder %s28, 1
      %p145 = por %p143, %p144
      %p147 = scmp.ne.s32.totalorder %s130, %s146
      %p148 = scmp.eq.s32.totalorder %s28, 0
      %p149 = por %p147, %p148
      %s150 = ssub.s32 %s22, %s29
      %p151 = scmp.eq.s32.totalorder %s150, 0
      %s153 = sadd.s32 %s152, 1
      %s154 = scalar_select %p151, %s152, %s153
      %p157 = pneg %p151
      %p158 = scmp.eq.s32.totalorder %s22, 1
      %p159 = por %p157, %p158
      %p160 = scmp.ne.s32.totalorder %s152, %s155
      %p161 = scmp.eq.s32.totalorder %s22, 0
      %p162 = por %p160, %p161
      %p163 = scmp.ne.s32.totalorder %s152, %s155
      %p164 = scmp.eq.s32.totalorder %s27, 1
      %p165 = por %p163, %p164
      %p166 = scmp.ne.s32.totalorder %s155, %s156
      %p167 = scmp.eq.s32.totalorder %s27, 0
      %p168 = por %p166, %p167
      %p169 = scmp.ne.s32.totalorder %s155, %s156
      %p170 = scmp.eq.s32.totalorder %s28, 1
      %p171 = por %p169, %p170
      %p173 = scmp.ne.s32.totalorder %s156, %s172
      %p174 = scmp.eq.s32.totalorder %s28, 0
      %p175 = por %p173, %p174
      %p176 = scmp.le.s32.totalorder 1, %s22
      %p177 = scmp.lt.s32.totalorder %s22, 3
      %p178 = pnand %p176, %p177
      %p179 = pneg %p178
      // Predicated region
      $region9: #{tpu_custom_call.1} parent=5 // pred_check
        _
      $region10: #{tpu_custom_call.1} parent=5 // pred_check_branch
        %181 = sbr.rel (%p178) target = $region12
      $region11: #{tpu_custom_call.1} parent=5 // pred_region
        %s182 = ssub.s32 %s22, 1
        // Predicated region
        $region13: #{tpu_custom_call.1} parent=11 // pred_check
          %p183 = pneg %p69
        $region14: #{tpu_custom_call.1} parent=11 // pred_check_branch
          %185 = sbr.rel (%p183) target = $region16
        $region15: #{tpu_custom_call.1} parent=11 // pred_region
          %s187 = ssub.s32 256, 256
          %188 = vsyncadd [#allocation6], %s187
          %s189 = sshll.u32 [#allocation5], 4
          %s190 = int_to_ptr.vmem [resolvable:$true] %s189
          %195 = dma.hbm_to_vmem [thread:$0]  %s1, 256, %s190, [#allocation6], 64, 64, 4
        $region16: #{tpu_custom_call.1} parent=11 // pred_fallthru
          _
        // Predicated region
        $region17: #{tpu_custom_call.1} parent=11 // pred_check
          %p196 = pneg %p116
        $region18: #{tpu_custom_call.1} parent=11 // pred_check_branch
          %198 = sbr.rel (%p196) target = $region20
        $region19: #{tpu_custom_call.1} parent=11 // pred_region
          %s200 = ssub.s32 1024, 1024
          %201 = vsyncadd [#allocation6], %s200
          %s202 = sshll.u32 [#allocation8], 4
          %s203 = int_to_ptr.vmem [resolvable:$true] %s202
          %208 = dma.hbm_to_vmem [thread:$0]  %s3, 1024, %s203, [#allocation6], 64, 64, 4
        $region20: #{tpu_custom_call.1} parent=11 // pred_fallthru
          _
      $region12: #{tpu_custom_call.1} parent=5 // pred_fallthru
        _
      %p209 = scmp.lt.s32.totalorder %s22, 2
      // Predicated region
      $region21: #{tpu_custom_call.1} parent=5 // pred_check
        %p210 = pneg %p209
      $region22: #{tpu_custom_call.1} parent=5 // pred_check_branch
        %212 = sbr.rel (%p210) target = $region24
      $region23: #{tpu_custom_call.1} parent=5 // pred_region
        // Predicated region
        $region25: #{tpu_custom_call.1} parent=23 // pred_check
          %p213 = pneg %p42
        $region26: #{tpu_custom_call.1} parent=23 // pred_check_branch
          %215 = sbr.rel (%p213) target = $region28
        $region27: #{tpu_custom_call.1} parent=23 // pred_region
          %s216 = sand.u32 %s22, 1
          %s217 = scalar_lea.sflag [#allocation3], %s216
          %s218 = sand.u32 %s32, 1
          %s219 = smul.addr %s218, 8
          %s220 = scalar_lea.vmem [#allocation2], %s219
          %s221 = smul.u32 2, %s22
          %s223 = ssub.s32 128, 128
          %224 = vsyncadd %s217, %s223
          %s225 = smul.addr %s221, 64
          %s226 = scalar_lea.hbm %s0, %s225
          %s227 = sshll.u32 %s220, 4
          %s228 = int_to_ptr.vmem [resolvable:$true] %s227
          %233 = dma.hbm_to_vmem [thread:$0]  %s226, 128, %s228, %s217, 64, 64, 4
        $region28: #{tpu_custom_call.1} parent=23 // pred_fallthru
          _
        // Predicated region
        $region29: #{tpu_custom_call.1} parent=23 // pred_check
          %p234 = pneg %p89
        $region30: #{tpu_custom_call.1} parent=23 // pred_check_branch
          %236 = sbr.rel (%p234) target = $region32
        $region31: #{tpu_custom_call.1} parent=23 // pred_region
          %s237 = sand.u32 %s22, 1
          %s238 = scalar_lea.sflag [#allocation3], %s237
          %s239 = sand.u32 %s79, 1
          %s240 = smul.addr %s239, 8
          %s241 = scalar_lea.vmem [#allocation7], %s240
          %s242 = smul.u32 2, %s22
          %s244 = ssub.s32 128, 128
          %245 = vsyncadd %s238, %s244
          %s246 = smul.addr %s242, 64
          %s247 = scalar_lea.hbm %s2, %s246
          %s248 = sshll.u32 %s241, 4
          %s249 = int_to_ptr.vmem [resolvable:$true] %s248
          %254 = dma.hbm_to_vmem [thread:$0]  %s247, 128, %s249, %s238, 64, 64, 4
        $region32: #{tpu_custom_call.1} parent=23 // pred_fallthru
          _
      $region24: #{tpu_custom_call.1} parent=5 // pred_fallthru
        _
      %p255 = scmp.le.s32.totalorder 1, %s22
      %p256 = scmp.lt.s32.totalorder %s22, 3
      %p257 = pnand %p255, %p256
      %p258 = pneg %p257
      // Predicated region
      $region33: #{tpu_custom_call.1} parent=5 // pred_check
        _
      $region34: #{tpu_custom_call.1} parent=5 // pred_check_branch
        %260 = sbr.rel (%p257) target = $region36
      $region35: #{tpu_custom_call.1} parent=5 // pred_region
        %s261 = ssub.s32 %s22, 1
        %s262 = sand.u32 %s27, 1
        %s263 = scalar_lea.sflag [#allocation3], %s262
        %s264 = sand.u32 %s35, 1
        %s265 = smul.addr %s264, 8
        %s266 = scalar_lea.vmem [#allocation2], %s265
        // Predicated region
        $region37: #{tpu_custom_call.1} parent=35 // pred_check
          %p267 = pneg %p48
        $region38: #{tpu_custom_call.1} parent=35 // pred_check_branch
          %269 = sbr.rel (%p267) target = $region40
        $region39: #{tpu_custom_call.1} parent=35 // pred_region
          %270 = dma.done %s263, 128
        $region40: #{tpu_custom_call.1} parent=35 // pred_fallthru
          _
        // Predicated region
        $region41: #{tpu_custom_call.1} parent=35 // pred_check
          %p271 = pneg %p69
        $region42: #{tpu_custom_call.1} parent=35 // pred_check_branch
          %273 = sbr.rel (%p271) target = $region44
        $region43: #{tpu_custom_call.1} parent=35 // pred_region
          %274 = dma.done [#allocation6], 256
        $region44: #{tpu_custom_call.1} parent=35 // pred_fallthru
          _
        %s275 = sand.u32 %s27, 1
        %s276 = scalar_lea.sflag [#allocation3], %s275
        %s277 = sand.u32 %s82, 1
        %s278 = smul.addr %s277, 8
        %s279 = scalar_lea.vmem [#allocation7], %s278
        // Predicated region
        $region45: #{tpu_custom_call.1} parent=35 // pred_check
          %p280 = pneg %p95
        $region46: #{tpu_custom_call.1} parent=35 // pred_check_branch
          %282 = sbr.rel (%p280) target = $region48
        $region47: #{tpu_custom_call.1} parent=35 // pred_region
          %283 = dma.done %s276, 128
        $region48: #{tpu_custom_call.1} parent=35 // pred_fallthru
          _
        // Predicated region
        $region49: #{tpu_custom_call.1} parent=35 // pred_check
          %p284 = pneg %p116
        $region50: #{tpu_custom_call.1} parent=35 // pred_check_branch
          %286 = sbr.rel (%p284) target = $region52
        $region51: #{tpu_custom_call.1} parent=35 // pred_region
          %287 = dma.done [#allocation6], 1024
        $region52: #{tpu_custom_call.1} parent=35 // pred_fallthru
          _
        %s288 = sand.u32 %s27, 1
        %s289 = scalar_lea.sflag [#allocation3], %s288
        %s290 = sand.u32 %s35, 1
        %s291 = smul.addr %s290, 8
        %s292 = scalar_lea.vmem [#allocation2], %s291
        %p293 = pneg %p48
        %p294 = pneg %p45
        %p295 = pneg %p69
        %p296 = pneg %p66
        %s297 = sand.u32 %s27, 1
        %s298 = scalar_lea.sflag [#allocation3], %s297
        %s299 = sand.u32 %s82, 1
        %s300 = smul.addr %s299, 8
        %s301 = scalar_lea.vmem [#allocation7], %s300
        %p302 = pneg %p95
        %p303 = pneg %p92
        %p304 = pneg %p116
        %p305 = pneg %p113
        %p306 = pneg %p142
        %p307 = pneg %p139
        %s308 = sand.u32 %s129, 1
        %s309 = scalar_lea.sflag [#allocation4], %s308
        %s310 = sand.u32 %s129, 1
        %s311 = scalar_lea.vmem [#allocation9], %s310
        %p312 = pneg %p168
        %p313 = pneg %p165
        %s314 = sand.u32 %s155, 1
        %s315 = scalar_lea.sflag [#allocation11], %s314
        %s316 = sand.u32 %s155, 1
        %s317 = scalar_lea.vmem [#allocation10], %s316
        %s318 = smul.u32 2, %s27
        %s319 = smul.u32 2, %s27
        %v321 = vld [vmem:[%s266] sm:$0xf]
        %v322 = vld [vmem:[%s266 + $0x4] sm:$0xf]
        %v323 = vld [vmem:[#allocation8] sm:$0xf]
        %v324 = vld [vmem:[#allocation8 + $0x4] sm:$0xf]
        %v325 = vld [vmem:[#allocation8 + $0x8] sm:$0xf]
        %v326 = vld [vmem:[#allocation8 + $0xc] sm:$0xf]
        %v327 = vld [vmem:[#allocation8 + $0x10] sm:$0xf]
        %v328 = vld [vmem:[#allocation8 + $0x14] sm:$0xf]
        %v329 = vld [vmem:[#allocation8 + $0x18] sm:$0xf]
        %v330 = vld [vmem:[#allocation8 + $0x1c] sm:$0xf]
        %v331 = vld [vmem:[#allocation8 + $0x20] sm:$0xf]
        %v332 = vld [vmem:[#allocation8 + $0x24] sm:$0xf]
        %v333 = vld [vmem:[#allocation8 + $0x28] sm:$0xf]
        %v334 = vld [vmem:[#allocation8 + $0x2c] sm:$0xf]
        %v335 = vld [vmem:[#allocation8 + $0x30] sm:$0xf]
        %v336 = vld [vmem:[#allocation8 + $0x34] sm:$0xf]
        %v337 = vld [vmem:[#allocation8 + $0x38] sm:$0xf]
        %v338 = vld [vmem:[#allocation8 + $0x3c] sm:$0xf]
        %v341 = vunpack.c.l.b16 %v321
        %v342 = vunpack.c.l.b16 %v322
        %v343 = vpack.c.b16 %v342, %v341
        %v361 = vunpack.c.l.b16 %v323
        %v362 = vunpack.c.l.b16 %v324
        %v363 = vunpack.c.l.b16 %v325
        %v364 = vunpack.c.l.b16 %v326
        %v365 = vunpack.c.l.b16 %v327
        %v366 = vunpack.c.l.b16 %v328
        %v367 = vunpack.c.l.b16 %v329
        %v368 = vunpack.c.l.b16 %v330
        %v369 = vunpack.c.l.b16 %v331
        %v370 = vunpack.c.l.b16 %v332
        %v371 = vunpack.c.l.b16 %v333
        %v372 = vunpack.c.l.b16 %v334
        %v373 = vunpack.c.l.b16 %v335
        %v374 = vunpack.c.l.b16 %v336
        %v375 = vunpack.c.l.b16 %v337
        %v376 = vunpack.c.l.b16 %v338
        %v377 = vpack.c.b16 %v362, %v361
        %v378 = vpack.c.b16 %v364, %v363
        %v379 = vpack.c.b16 %v366, %v365
        %v380 = vpack.c.b16 %v368, %v367
        %v381 = vpack.c.b16 %v370, %v369
        %v382 = vpack.c.b16 %v372, %v371
        %v383 = vpack.c.b16 %v374, %v373
        %v384 = vpack.c.b16 %v376, %v375
        %393 = vmatprep.subr.bf16.mxu0 0
        %394 = vmatpush1.bf16.msra.mxu0 %v377
        %395 = vmatprep.subr.bf16.mxu0 0
        %396 = vmatpush1.bf16.msra.mxu0 %v378
        %397 = vmatprep.subr.bf16.mxu0 0
        %398 = vmatpush1.bf16.msra.mxu0 %v379
        %399 = vmatprep.subr.bf16.mxu0 0
        %400 = vmatpush1.bf16.msra.mxu0 %v380
        %401 = vmatprep.subr.bf16.mxu0 0
        %402 = vmatpush1.bf16.msra.mxu0 %v381
        %403 = vmatprep.subr.bf16.mxu0 0
        %404 = vmatpush1.bf16.msra.mxu0 %v382
        %405 = vmatprep.subr.bf16.mxu0 0
        %406 = vmatpush1.bf16.msra.mxu0 %v383
        %407 = vmatprep.subr.bf16.mxu0 0
        %408 = vmatpush1.bf16.msra.mxu0 %v384
        %409 = vmatprep.subr.bf16.mxu0 0
        %410 = vmatpush1.bf16.msra.mxu0 0
        %411 = vmatprep.subr.bf16.mxu0 0
        %412 = vmatpush1.bf16.msra.mxu0 0
        %413 = vmatprep.subr.bf16.mxu0 0
        %414 = vmatpush1.bf16.msra.mxu0 0
        %415 = vmatprep.subr.bf16.mxu0 0
        %416 = vmatpush1.bf16.msra.mxu0 0
        %417 = vmatprep.subr.bf16.mxu0 0
        %418 = vmatpush1.bf16.msra.mxu0 0
        %419 = vmatprep.subr.bf16.mxu0 0
        %420 = vmatpush1.bf16.msra.mxu0 0
        %421 = vmatprep.subr.bf16.mxu0 0
        %422 = vmatpush1.bf16.msra.mxu0 0
        %423 = vmatprep.subr.bf16.mxu0 0
        %424 = vmatpush1.bf16.msra.mxu0 0
        %425 = vmatprep.mubr.bf16.mxu0 0
        %426 = vmatmul.mubr.bf16.gmra.mrb[0].mxu0 %v343
        %v427 = vpop.f32.mrb[0].mxu0
        %v428 = vadd.f32 0.0, %v427
        %v429 = vpop.f32.mrb[0].mxu0
        %v430 = vpop.f32.mrb[0].mxu0
        %v431 = vadd.f32 0.0, %v430
        %v432 = vpop.f32.mrb[0].mxu0
        %433 = vdwg.mxu0
        %v434 = vpack.c.bf16 %v431, %v428
        %v435 = vld [vmem:[#allocation5] sm:$0xf]
        %v436 = vld [vmem:[#allocation5 + $0x4] sm:$0xf]
        %v437 = vld [vmem:[#allocation5 + $0x8] sm:$0xf]
        %v438 = vld [vmem:[#allocation5 + $0xc] sm:$0xf]
        %v443 = vunpack.c.l.b16 %v435
        %v444 = vunpack.c.l.b16 %v436
        %v445 = vunpack.c.l.b16 %v437
        %v446 = vunpack.c.l.b16 %v438
        %v447 = vpack.c.b16 %v444, %v443
        %v448 = vpack.c.b16 %v446, %v445
        %451 = vmatprep.subr.bf16.mxu0 0
        %452 = vmatpush1.bf16.xpose.msra.mxu0 %v447
        %453 = vmatprep.subr.bf16.mxu0 0
        %454 = vmatpush1.bf16.xpose.msra.mxu0 %v448
        %455 = vmatprep.subr.bf16.mxu0 0
        %456 = vmatpush1.bf16.xpose.msra.mxu0 0
        %457 = vmatprep.subr.bf16.mxu0 0
        %458 = vmatpush1.bf16.xpose.msra.mxu0 0
        %459 = vmatprep.subr.bf16.mxu0 0
        %460 = vmatpush1.bf16.xpose.msra.mxu0 0
        %461 = vmatprep.subr.bf16.mxu0 0
        %462 = vmatpush1.bf16.xpose.msra.mxu0 0
        %463 = vmatprep.subr.bf16.mxu0 0
        %464 = vmatpush1.bf16.xpose.msra.mxu0 0
        %465 = vmatprep.subr.bf16.mxu0 0
        %466 = vmatpush1.bf16.xpose.msra.mxu0 0
        %467 = vmatprep.subr.bf16.mxu0 0
        %468 = vmatpush1.bf16.xpose.msra.mxu0 0
        %469 = vmatprep.subr.bf16.mxu0 0
        %470 = vmatpush1.bf16.xpose.msra.mxu0 0
        %471 = vmatprep.subr.bf16.mxu0 0
        %472 = vmatpush1.bf16.xpose.msra.mxu0 0
        %473 = vmatprep.subr.bf16.mxu0 0
        %474 = vmatpush1.bf16.xpose.msra.mxu0 0
        %475 = vmatprep.subr.bf16.mxu0 0
        %476 = vmatpush1.bf16.xpose.msra.mxu0 0
        %477 = vmatprep.subr.bf16.mxu0 0
        %478 = vmatpush1.bf16.xpose.msra.mxu0 0
        %479 = vmatprep.subr.bf16.mxu0 0
        %480 = vmatpush1.bf16.xpose.msra.mxu0 0
        %481 = vmatprep.subr.bf16.mxu0 0
        %482 = vmatpush1.bf16.xpose.msra.mxu0 0
        %483 = vmatprep.mubr.bf16.mxu0 0
        %484 = vmatmul.mubr.bf16.gmra.mrb[0].mxu0 %v434
        %v485 = vpop.f32.mrb[0].mxu0
        %v486 = vadd.f32 0.0, %v485
        %v487 = vpop.f32.mrb[0].mxu0
        %v488 = vpop.f32.mrb[0].mxu0
        %v489 = vadd.f32 0.0, %v488
        %v490 = vpop.f32.mrb[0].mxu0
        %491 = vdwg.mxu0
        %v492 = vunpack.c.l.bf16 %v434
        %v493 = vunpack.c.h.bf16 %v434
        %v494 = vld [vmem:[%s279] sm:$0xf]
        %v495 = vld [vmem:[%s279 + $0x4] sm:$0xf]
        %v496 = vunpack.c.l.bf16 %v494
        %v497 = vunpack.c.l.bf16 %v495
        %v498 = vmul.f32 %v492, %v496
        %v499 = vmul.f32 %v493, %v497
        %500 = vadd.xlane.f32.xlu0 %v498
        %v501 = vpop.xlane.xlu0 %500
        %502 = vadd.xlane.f32.xlu0 %v499
        %v503 = vpop.xlane.xlu0 %502
        %vm504 = vcmask 261120
        %v505 = vsel %vm504, %v486, -inf
        %506 = vmax.xlane.f32.xlu0 %v505
        %v507 = vpop.xlane.xlu0 %506
        %v508 = vsel %vm504, %v489, -inf
        %509 = vmax.xlane.f32.xlu0 %v508
        %v510 = vpop.xlane.xlu0 %509
        %v511 = vsub.f32 %v486, %v507
        %v512 = vsub.f32 %v489, %v510
        %v513 = vmul.f32 %v511, 1.442695
        %v514 = vpow.pop %v513
        %v515 = vmul.f32 %v512, 1.442695
        %v516 = vpow.pop %v515
        %v517 = vsel %vm504, %v514, 0.0
        %518 = vadd.xlane.f32.xlu0 %v517
        %v519 = vpop.xlane.xlu0 %518
        %v520 = vsel %vm504, %v516, 0.0
        %521 = vadd.xlane.f32.xlu0 %v520
        %v522 = vpop.xlane.xlu0 %521
        %v523 = vlog2.pop %v519
        %v524 = vmul.f32 %v523, 0.6931472
        %v525 = vlog2.pop %v522
        %v526 = vmul.f32 %v525, 0.6931472
        %v527 = vadd.f32 %v507, %v524
        %v528 = vadd.f32 %v510, %v526
        %v529 = vmax.f32 %v507, %v510
        %v530 = vrot.slane %v529, 4
        %v531 = vmax.f32 %v529, %v530
        %v532 = vrot.slane %v531, 2
        %v533 = vmax.f32 %v531, %v532
        %v534 = vrot.slane %v533, 1
        %v535 = vmax.f32 %v533, %v534
        %s536 = vtos %v535
        %v537 = vstv %s536
        %v538 = vsub.f32 %v507, %v537
        %v539 = vsub.f32 %v510, %v537
        %v540 = vmul.f32 %v538, 1.442695
        %v541 = vpow.pop %v540
        %v542 = vmul.f32 %v539, 1.442695
        %v543 = vpow.pop %v542
        %v544 = vmul.f32 %v514, %v541
        %v545 = vmul.f32 %v516, %v543
        %v546 = vsel %vm504, %v544, 0.0
        %v547 = vsel %vm504, %v545, 0.0
        %v548 = vadd.f32 %v546, %v547
        %v549 = vrot.slane %v548, 4
        %v550 = vadd.f32 %v548, %v549
        %v551 = vrot.slane %v550, 2
        %v552 = vadd.f32 %v550, %v551
        %v553 = vrot.slane %v552, 1
        %v554 = vadd.f32 %v552, %v553
        %v555 = vlog2.pop %v554
        %v556 = vmul.f32 %v555, 0.6931472
        %v557 = vadd.f32 %v537, %v556
        %vm558 = vcmask 253952
        %559 = vst.msk [vmem:[%s317] sm:$0x1] %vm558, %v557
        %v560 = vlaneseq
        %v561 = vand.u32 %v560, 127
        %vm562 = vcmp.eq.s32.totalorder %v561, 0
        %vm563 = vcmask 7168
        %v564 = vsel %vm563, %v527, 0.0
        %v565 = vsel %vm563, %v528, 0.0
        %v566 = vadd.f32 %v564, %v565
        %567 = vadd.xlane.f32.xlu0 %v566
        %v568 = vpop.xlane.xlu0 %567
        %v569 = vrot.slane %v568, 4
        %v570 = vadd.f32 %v568, %v569
        %v571 = vrot.slane %v570, 2
        %v572 = vadd.f32 %v570, %v571
        %v573 = vrot.slane %v572, 1
        %v574 = vadd.f32 %v572, %v573
        %s575 = vtos %v574
        %v576 = vstv %s575
        %v577 = vsel %vm562, %v576, 0.0
        %vm578 = vcmp.eq.s32.totalorder %v561, 1
        %v579 = vsel %vm563, %v501, 0.0
        %v580 = vsel %vm563, %v503, 0.0
        %v581 = vadd.f32 %v579, %v580
        %582 = vadd.xlane.f32.xlu0 %v581
        %v583 = vpop.xlane.xlu0 %582
        %v584 = vrot.slane %v583, 4
        %v585 = vadd.f32 %v583, %v584
        %v586 = vrot.slane %v585, 2
        %v587 = vadd.f32 %v585, %v586
        %v588 = vrot.slane %v587, 1
        %v589 = vadd.f32 %v587, %v588
        %s590 = vtos %v589
        %v591 = vstv %s590
        %v592 = vsel %vm578, %v591, 0.0
        %v593 = vadd.f32 %v577, %v592
        %594 = vst [vmem:[%s311] sm:$0x1] %v593
        %s595 = sand.u32 %s129, 1
        %s596 = scalar_lea.sflag [#allocation4], %s595
        %s597 = sand.u32 %s129, 1
        %s598 = scalar_lea.vmem [#allocation9], %s597
        %s599 = sand.u32 %s155, 1
        %s600 = scalar_lea.sflag [#allocation11], %s599
        %s601 = sand.u32 %s155, 1
        %s602 = scalar_lea.vmem [#allocation10], %s601
        // Predicated region
        $region53: #{tpu_custom_call.1} parent=35 // pred_check
          %p603 = pneg %p139
        $region54: #{tpu_custom_call.1} parent=35 // pred_check_branch
          %605 = sbr.rel (%p603) target = $region56
        $region55: #{tpu_custom_call.1} parent=35 // pred_region
          %s607 = ssub.s32 16, 16
          %608 = vsyncadd %s596, %s607
          %s609 = smul.addr %s27, 16
          %s610 = scalar_lea.hbm %s4, %s609
          %s612 = sshll.u32 %s598, 4
          %s613 = int_to_ptr.vmem [resolvable:$true] %s612
          %615 = dma.vmem_to_hbm [thread:$0]  %s613, 16, %s610, %s596
        $region56: #{tpu_custom_call.1} parent=35 // pred_fallthru
          _
        // Predicated region
        $region57: #{tpu_custom_call.1} parent=35 // pred_check
          %p616 = pneg %p165
        $region58: #{tpu_custom_call.1} parent=35 // pred_check_branch
          %618 = sbr.rel (%p616) target = $region60
        $region59: #{tpu_custom_call.1} parent=35 // pred_region
          %s620 = ssub.s32 16, 16
          %621 = vsyncadd %s600, %s620
          %s622 = smul.addr %s27, 16
          %s623 = scalar_lea.hbm %s5, %s622
          %s625 = sshll.u32 %s602, 4
          %s626 = int_to_ptr.vmem [resolvable:$true] %s625
          %628 = dma.vmem_to_hbm [thread:$0]  %s626, 16, %s623, %s600
        $region60: #{tpu_custom_call.1} parent=35 // pred_fallthru
          _
      $region36: #{tpu_custom_call.1} parent=5 // pred_fallthru
        _
      %p629 = scmp.le.s32.totalorder 2, %s22
      // Predicated region
      $region61: #{tpu_custom_call.1} parent=5 // pred_check
        %p630 = pneg %p629
      $region62: #{tpu_custom_call.1} parent=5 // pred_check_branch
        %632 = sbr.rel (%p630) target = $region64
      $region63: #{tpu_custom_call.1} parent=5 // pred_region
        %s633 = ssub.s32 %s22, 2
        // Predicated region
        $region65: #{tpu_custom_call.1} parent=63 // pred_check
          %p634 = pneg %p145
        $region66: #{tpu_custom_call.1} parent=63 // pred_check_branch
          %636 = sbr.rel (%p634) target = $region68
        $region67: #{tpu_custom_call.1} parent=63 // pred_region
          %s637 = sand.u32 %s130, 1
          %s638 = scalar_lea.sflag [#allocation4], %s637
          %s639 = sand.u32 %s130, 1
          %s640 = scalar_lea.vmem [#allocation9], %s639
          %641 = dma.done %s638, 16
        $region68: #{tpu_custom_call.1} parent=63 // pred_fallthru
          _
        // Predicated region
        $region69: #{tpu_custom_call.1} parent=63 // pred_check
          %p642 = pneg %p171
        $region70: #{tpu_custom_call.1} parent=63 // pred_check_branch
          %644 = sbr.rel (%p642) target = $region72
        $region71: #{tpu_custom_call.1} parent=63 // pred_region
          %s645 = sand.u32 %s156, 1
          %s646 = scalar_lea.sflag [#allocation11], %s645
          %s647 = sand.u32 %s156, 1
          %s648 = scalar_lea.vmem [#allocation10], %s647
          %649 = dma.done %s646, 16
        $region72: #{tpu_custom_call.1} parent=63 // pred_fallthru
          _
      $region64: #{tpu_custom_call.1} parent=5 // pred_fallthru
        _
    $region6: #{tpu_custom_call.1} parent=1 // loop_footer
      %s26 = sadd.s32 1, %s22
    $region7: #{tpu_custom_call.1} parent=1 // loop_footer_branch
      %21 = sbr.rel target = $region3
    $region8: #{tpu_custom_call.1} parent=1 // loop_exit
      _
    %650 = vsyncpa [#allocation3], 1
    %s651 = scalar_lea.sflag [#allocation3], 1
    %652 = vsyncpa %s651, 1
    %653 = vsyncpa [#allocation6], 1
    %654 = vsyncpa [#allocation4], 1
    %s655 = scalar_lea.sflag [#allocation4], 1
    %656 = vsyncpa %s655, 1
    %657 = vsyncpa [#allocation11], 1
    %s658 = scalar_lea.sflag [#allocation11], 1
    %659 = vsyncpa %s658, 1

</llo_original>
